<compile_context>
chip_gen: v7x
topology: tpu7x:2x2x1
jax: 0.10.0
libtpu: 0.0.40
codegen_flags: <defaults>
</compile_context>

<pallas_src>
import functools

import numpy as np
import jax
import jax.numpy as jnp
from jax.experimental import pallas as pl
from jax.experimental.pallas import tpu as pltpu  # noqa: F401  (TPU backend assumed)

LANE = 128


# ----------------------------------------------------------------------------- utilities
def _morton_yx(size):
    """z-index -> (y, x) coords for a size x size grid (y bit more significant per level)."""
    idx = np.arange(size * size)
    nbits = int(np.log2(size))
    y = np.zeros_like(idx)
    x = np.zeros_like(idx)
    for b in range(nbits):
        x |= ((idx >> (2 * b)) & 1) << b
        y |= ((idx >> (2 * b + 1)) & 1) << b
    return y, x


def _pad_block(m):
    r, c = m.shape
    assert r <= LANE and c <= LANE, (r, c)
    out = np.zeros((LANE, LANE), np.float32)
    out[:r, :c] = m
    return out


def _pad_row(v):
    out = np.zeros((LANE,), np.float32)
    out[: v.shape[0]] = v
    return out


# ------------------------------------------------------------------------- parameter init
def make_conv_params(key, in_ch, out_ch, k):
    # Deterministic synthetic init (PyTorch-like uniform(-1/sqrt(fan_in), 1/sqrt(fan_in))).
    kw, kb = jax.random.split(key)
    fan_in = in_ch * k * k
    bound = 1.0 / (fan_in ** 0.5)
    W = jax.random.uniform(kw, (out_ch, in_ch, k, k), jnp.float32, -bound, bound)
    b = jax.random.uniform(kb, (out_ch,), jnp.float32, -bound, bound)
    return W, b


def build_params(qbits, ocpr, in_channels, key):
    """Mirror FancySeparator.make_convs channel/kernel bookkeeping exactly."""
    out_channels = in_channels * ocpr
    ch_mult = ocpr ** (1.0 / (qbits - 1))
    in_ch = in_channels
    out_ch = int(in_ch * ch_mult)
    convs, convs_prim = [], []
    for i in range(1, qbits - 1):
        curr_dim = 2 ** (qbits - i)
        key, k1, k2 = jax.random.split(key, 3)
        convs.append(make_conv_params(k1, in_ch, out_channels, curr_dim))  # k=stride=curr_dim
        convs_prim.append(make_conv_params(k2, in_ch, out_ch, 2))          # k=2, dil=curr_dim
        in_ch = out_ch
        out_ch = int(in_ch * ch_mult)
    key, k1, k2 = jax.random.split(key, 3)
    convs.append(make_conv_params(k1, in_ch, out_channels, 2))             # k=2, stride=2
    convs.append(make_conv_params(k2, in_ch, out_channels, 2))             # k=2, dilation=2
    return convs, convs_prim


# --------------------------------------------------------------- host-side weight packing
def pack_params(convs, convs_prim, qbits, in_channels, out_channels):
    """Permute/zero-pad all conv weights into one lane-dense slab (done once, in NumPy).

    Block order per stage s (consumed by the kernel in the same order):
      1 stride-head block, then 4 dilated blocks (chain conv, or the final dilated head
      at the last stage).  One 128-wide bias row per conv.
    Returns (w_all (NBLK*128, 128), b_all (8, 128), l_list) with l_list the per-stage
    real contraction sizes (static Python ints).
    """
    chans = [in_channels] + [int(np.asarray(w).shape[0]) for (w, _) in convs_prim]
    w_blocks, b_rows, l_list = [], [], []
    for s in range(qbits - 1):
        D = 2 ** (qbits - 1 - s)          # quadrant size at stage s
        P = D * D                         # pixels per quadrant
        Cs = chans[s]
        L = P * Cs                        # real contraction width of this stage
        assert L <= LANE, "stage does not fit in one 128-lane tile"
        l_list.append(L)
        ys, xs = _morton_yx(D)

        # --- stride-conv head s  (convs[s]: kernel=D, stride=D)
        Wh, bh = convs[s]
        Wh = np.asarray(Wh, np.float32)
        bh = np.asarray(bh, np.float32)
        # W_head[(p*Cs + c), co] = Wh[co, c, y_z(p), x_z(p)]
        Whm = Wh[:, :, ys, xs].transpose(2, 1, 0).reshape(L, out_channels)
        w_blocks.append(_pad_block(Whm))
        b_rows.append(_pad_row(bh))

        # --- dilated conv at this stage: chain step, or the final dilated head
        if s < qbits - 2:
            Wd, bd = convs_prim[s]
            Cn = chans[s + 1]
        else:
            Wd, bd = convs[qbits - 1]
            Cn = out_channels
        Wd = np.asarray(Wd, np.float32)
        bd = np.asarray(bd, np.float32)
        assert P * Cn <= LANE
        for q in range(4):
            ky, kx = q // 2, q % 2
            # block-diagonal kron(I_P, Wd[:, :, ky, kx].T): [(p*Cs+c), (p*Cn+co)]
            Wq = np.kron(np.eye(P, dtype=np.float32), Wd[:, :, ky, kx].T)
            w_blocks.append(_pad_block(Wq))
        b_rows.append(_pad_row(np.tile(bd, P)))

    w_all = np.concatenate(w_blocks, axis=0)               # (NBLK*128, 128)
    b_all = np.stack(b_rows, axis=0)                       # (2*qbits-2, 128)
    pad_rows = (-b_all.shape[0]) % 8
    if pad_rows:
        b_all = np.pad(b_all, ((0, pad_rows), (0, 0)))
    return jnp.asarray(w_all), jnp.asarray(b_all), tuple(l_list)


# --------------------------------------------------------------------------- fused kernel
def _make_kernel(qbits, n, l_list):
    def kernel(x_ref, w_ref, b_ref, o_ref):
        # x_ref: (4, n, LANE)   quadrant pieces of the input (rows=batch, lanes=(pixel,chan))
        # w_ref: (NBLK*LANE, LANE) packed zero-padded weight blocks
        # b_ref: (8, LANE)      packed bias rows
        # o_ref: (4n, qbits*LANE) output slab, one full 128-lane block per head
        X = [x_ref[q] for q in range(4)]                 # each (n, LANE), f32
        blk, brow = 0, 0
        for s in range(qbits - 1):                       # static unrolled chain
            L = l_list[s]

            # ---- stride-conv head s: full contraction of each quadrant -> 2x2 output
            wh = w_ref[blk * LANE: blk * LANE + L, :]    # (L, LANE)
            bh = b_ref[brow: brow + 1, :]                # (1, LANE)
            blk += 1
            brow += 1
            for q in range(4):
                h = jnp.dot(X[q][:, :L], wh,
                            preferred_element_type=jnp.float32) + bh
                o_ref[q * n:(q + 1) * n, s * LANE:(s + 1) * LANE] = h

            # ---- dilated conv: chain step (feeds next stage) or final dilated head
            bd = b_ref[brow: brow + 1, :]
            brow += 1
            acc = jnp.dot(X[0][:, :L], w_ref[blk * LANE: blk * LANE + L, :],
                          preferred_element_type=jnp.float32)
            for q in range(1, 4):
                wd = w_ref[(blk + q) * LANE: (blk + q) * LANE + L, :]
                acc = acc + jnp.dot(X[q][:, :L], wd,
                                    preferred_element_type=jnp.float32)
            acc = acc + bd                               # (n, LANE)
            blk += 4
            if s < qbits - 2:
                # split the new D x D image into its 4 quadrant pieces: with Morton pixel
                # ordering this is a pure static lane slice.
                w_next = l_list[s + 1]
                X = [acc[:, q * w_next:(q + 1) * w_next] for q in range(4)]
            else:
                o_ref[0:n, (qbits - 1) * LANE: qbits * LANE] = acc
    return kernel


# -------------------------------------------------------------------------------- wrapper
@functools.partial(jax.jit, static_argnames=("qbits", "out_channels", "l_list"))
def fancy_separator_forward(x, w_all, b_all, *, qbits, out_channels, l_list):
    """FancySeparator.forward (noise=False, fc_layers=0): list of qbits (N, out_channels, 2, 2)."""
    N, C, S, _ = x.shape
    D = S // 2
    P = D * D
    assert P * C <= LANE

    # Relayout the input into 4 quadrant pieces (Morton pixel order within each quadrant):
    #   x0[q, n, p*C + c] = x[n, c, qy*D + y_z(p), qx*D + x_z(p)],  q = 2*qy + qx
    ys, xs = _morton_yx(S)
    xg = x[:, :, ys, xs]                                              # (N, C, S*S)
    xg = xg.reshape(N, C, 4, P).transpose(2, 0, 3, 1).reshape(4, N, P * C)
    x0 = jnp.pad(xg, ((0, 0), (0, 0), (0, LANE - P * C)))

    nblk = w_all.shape[0] // LANE
    nbias = b_all.shape[0]
    slab = pl.pallas_call(
        _make_kernel(qbits, N, l_list),
        out_shape=jax.ShapeDtypeStruct((4 * N, qbits * LANE), jnp.float32),
        grid=(1,),
        in_specs=[
            pl.BlockSpec((4, N, LANE), lambda i: (0, 0, 0)),
            pl.BlockSpec((nblk * LANE, LANE), lambda i: (0, 0)),
            pl.BlockSpec((nbias, LANE), lambda i: (0, 0)),
        ],
        out_specs=pl.BlockSpec((4 * N, qbits * LANE), lambda i: (0, 0)),
    )(x0, w_all, b_all)

    # Tiny (32-value) per-head conversions back to NCHW.
    outs = []
    for s in range(qbits - 1):
        # rows = (2*oy + ox) * N + n, lanes = co
        h = slab[0:4 * N, s * LANE: s * LANE + out_channels]
        outs.append(h.reshape(2, 2, N, out_channels).transpose(2, 3, 0, 1))
    # final dilated head: rows = n, lanes = (2*oy + ox) * out_channels + co
    h = slab[0:N, (qbits - 1) * LANE: (qbits - 1) * LANE + 4 * out_channels]
    outs.append(h.reshape(N, 2, 2, out_channels).transpose(0, 3, 1, 2))
    return outs


# ------------------------------------------------------------------------------ reference
def ref_forward(x, convs, convs_prim, qbits):
    """Pure-JAX reference using lax.conv_general_dilated (mirrors torch semantics)."""
    def conv(x, W, b, stride, dilation):
        y = jax.lax.conv_general_dilated(
            x, W, window_strides=(stride, stride), padding="VALID",
            rhs_dilation=(dilation, dilation),
            dimension_numbers=("NCHW", "OIHW", "NCHW"))
        return y + b.reshape(1, -1, 1, 1)

    x_temp = x
    W0, b0 = convs[0]
    outs = [conv(x_temp, W0, b0, W0.shape[-1], 1)]
    for i in range(1, qbits - 1):
        Wp, bp = convs_prim[i - 1]
        D = x_temp.shape[-1] // 2
        x_temp = conv(x_temp, Wp, bp, 1, D)
        Wi, bi = convs[i]
        outs.append(conv(x_temp, Wi, bi, Wi.shape[-1], 1))
    Wl, bl = convs[qbits - 1]
    outs.append(conv(x_temp, Wl, bl, 1, 2))
    return outs


# ----------------------------------------------------------------------------------- main
if __name__ == "__main__":
    qbits_num = 4          # dim = 2**4 = 16  -> input spatial 16x16
    ocpr = 2
    input_channels = 2
    batch = 2
    dim = 2 ** qbits_num
    out_channels = input_channels * ocpr

    key = jax.random.PRNGKey(0)
    kx, kp = jax.random.split(key)
    x = jax.random.normal(kx, (batch, input_channels, dim, dim), jnp.float32)
    convs, convs_prim = build_params(qbits_num, ocpr, input_channels, kp)
    w_all, b_all, l_list = pack_params(convs, convs_prim, qbits_num,
                                       input_channels, out_channels)

    outs = fancy_separator_forward(x, w_all, b_all, qbits=qbits_num,
                                   out_channels=out_channels, l_list=l_list)
    outs = [jax.block_until_ready(o) for o in outs]

    # Cross-check against the pure-JAX conv reference.
    refs = ref_forward(x, convs, convs_prim, qbits_num)
    assert len(outs) == qbits_num
    for o, r in zip(outs, refs):
        assert o.shape == (batch, out_channels, 2, 2), o.shape
        assert jnp.allclose(o, r, atol=1e-4, rtol=1e-4), "mismatch vs reference"

    print("KERNEL_OK")
</pallas_src>

<mosaic_0001>
module attributes {stable_mosaic.version = 11 : i64} {
  func.func @kernel(%arg0: i32, %arg1: memref<4x2x128xf32, #tpu.memory_space<vmem>>, %arg2: memref<1920x128xf32, #tpu.memory_space<vmem>>, %arg3: memref<8x128xf32, #tpu.memory_space<vmem>>, %arg4: memref<8x512xf32, #tpu.memory_space<vmem>>) attributes {dimension_semantics = [#tpu.dimension_semantics<arbitrary>], iteration_bounds = array<i64: 1>, scalar_prefetch = 0 : i64, scratch_operands = 0 : i64, tpu.core_type = #tpu.core_type<tc>, window_params = [{pipeline_mode = #tpu.pipeline_mode<synchronous>, transform_indices = @transform_0, window_bounds = array<i64: 4, 2, 128>}, {pipeline_mode = #tpu.pipeline_mode<synchronous>, transform_indices = @transform_1, window_bounds = array<i64: 1920, 128>}, {pipeline_mode = #tpu.pipeline_mode<synchronous>, transform_indices = @transform_2, window_bounds = array<i64: 8, 128>}, {pipeline_mode = #tpu.pipeline_mode<synchronous>, transform_indices = @transform_3, window_bounds = array<i64: 8, 512>}]} {
    %c0 = arith.constant 0 : index
    %c0_0 = arith.constant 0 : index
    %c0_1 = arith.constant 0 : index
    %0 = vector.load %arg1[%c0, %c0_0, %c0_1] : memref<4x2x128xf32, #tpu.memory_space<vmem>>, vector<1x2x128xf32>
    %1 = vector.shape_cast %0 : vector<1x2x128xf32> to vector<2x128xf32>
    %c1 = arith.constant 1 : index
    %c0_2 = arith.constant 0 : index
    %c0_3 = arith.constant 0 : index
    %2 = vector.load %arg1[%c1, %c0_2, %c0_3] : memref<4x2x128xf32, #tpu.memory_space<vmem>>, vector<1x2x128xf32>
    %3 = vector.shape_cast %2 : vector<1x2x128xf32> to vector<2x128xf32>
    %c2 = arith.constant 2 : index
    %c0_4 = arith.constant 0 : index
    %c0_5 = arith.constant 0 : index
    %4 = vector.load %arg1[%c2, %c0_4, %c0_5] : memref<4x2x128xf32, #tpu.memory_space<vmem>>, vector<1x2x128xf32>
    %5 = vector.shape_cast %4 : vector<1x2x128xf32> to vector<2x128xf32>
    %c3 = arith.constant 3 : index
    %c0_6 = arith.constant 0 : index
    %c0_7 = arith.constant 0 : index
    %6 = vector.load %arg1[%c3, %c0_6, %c0_7] : memref<4x2x128xf32, #tpu.memory_space<vmem>>, vector<1x2x128xf32>
    %7 = vector.shape_cast %6 : vector<1x2x128xf32> to vector<2x128xf32>
    %c0_8 = arith.constant 0 : index
    %c0_9 = arith.constant 0 : index
    %8 = vector.load %arg2[%c0_8, %c0_9] : memref<1920x128xf32, #tpu.memory_space<vmem>>, vector<128x128xf32>
    %c0_10 = arith.constant 0 : index
    %c0_11 = arith.constant 0 : index
    %9 = vector.load %arg3[%c0_10, %c0_11] : memref<8x128xf32, #tpu.memory_space<vmem>>, vector<1x128xf32>
    %cst = arith.constant dense<0.000000e+00> : vector<2x128xf32>
    %10 = tpu.matmul %1, %8, %cst {dimension_numbers = #tpu.dot_dimension_numbers<[1], [0], [0], [1], [0, 0, 1, 1], [], []>} : vector<2x128xf32>, vector<128x128xf32>, vector<2x128xf32> -> vector<2x128xf32>
    %11 = vector.broadcast %9 : vector<1x128xf32> to vector<2x128xf32>
    %12 = arith.addf %10, %11 : vector<2x128xf32>
    %c0_12 = arith.constant 0 : index
    %c0_13 = arith.constant 0 : index
    %13 = vector.load %arg4[%c0_12, %c0_13] : memref<8x512xf32, #tpu.memory_space<vmem>>, vector<2x128xf32>
    tpu.vector_store %arg4[%c0_12, %c0_13], %12 {strides = array<i32>} : memref<8x512xf32, #tpu.memory_space<vmem>>, vector<2x128xf32>,
    %cst_14 = arith.constant dense<0.000000e+00> : vector<2x128xf32>
    %14 = tpu.matmul %3, %8, %cst_14 {dimension_numbers = #tpu.dot_dimension_numbers<[1], [0], [0], [1], [0, 0, 1, 1], [], []>} : vector<2x128xf32>, vector<128x128xf32>, vector<2x128xf32> -> vector<2x128xf32>
    %15 = vector.broadcast %9 : vector<1x128xf32> to vector<2x128xf32>
    %16 = arith.addf %14, %15 : vector<2x128xf32>
    %c2_15 = arith.constant 2 : index
    %c0_16 = arith.constant 0 : index
    %17 = vector.load %arg4[%c2_15, %c0_16] : memref<8x512xf32, #tpu.memory_space<vmem>>, vector<2x128xf32>
    tpu.vector_store %arg4[%c2_15, %c0_16], %16 {strides = array<i32>} : memref<8x512xf32, #tpu.memory_space<vmem>>, vector<2x128xf32>,
    %cst_17 = arith.constant dense<0.000000e+00> : vector<2x128xf32>
    %18 = tpu.matmul %5, %8, %cst_17 {dimension_numbers = #tpu.dot_dimension_numbers<[1], [0], [0], [1], [0, 0, 1, 1], [], []>} : vector<2x128xf32>, vector<128x128xf32>, vector<2x128xf32> -> vector<2x128xf32>
    %19 = vector.broadcast %9 : vector<1x128xf32> to vector<2x128xf32>
    %20 = arith.addf %18, %19 : vector<2x128xf32>
    %c4 = arith.constant 4 : index
    %c0_18 = arith.constant 0 : index
    %21 = vector.load %arg4[%c4, %c0_18] : memref<8x512xf32, #tpu.memory_space<vmem>>, vector<2x128xf32>
    tpu.vector_store %arg4[%c4, %c0_18], %20 {strides = array<i32>} : memref<8x512xf32, #tpu.memory_space<vmem>>, vector<2x128xf32>,
    %cst_19 = arith.constant dense<0.000000e+00> : vector<2x128xf32>
    %22 = tpu.matmul %7, %8, %cst_19 {dimension_numbers = #tpu.dot_dimension_numbers<[1], [0], [0], [1], [0, 0, 1, 1], [], []>} : vector<2x128xf32>, vector<128x128xf32>, vector<2x128xf32> -> vector<2x128xf32>
    %23 = vector.broadcast %9 : vector<1x128xf32> to vector<2x128xf32>
    %24 = arith.addf %22, %23 : vector<2x128xf32>
    %c6 = arith.constant 6 : index
    %c0_20 = arith.constant 0 : index
    %25 = vector.load %arg4[%c6, %c0_20] : memref<8x512xf32, #tpu.memory_space<vmem>>, vector<2x128xf32>
    tpu.vector_store %arg4[%c6, %c0_20], %24 {strides = array<i32>} : memref<8x512xf32, #tpu.memory_space<vmem>>, vector<2x128xf32>,
    %c1_21 = arith.constant 1 : index
    %c0_22 = arith.constant 0 : index
    %26 = vector.load %arg3[%c1_21, %c0_22] : memref<8x128xf32, #tpu.memory_space<vmem>>, vector<1x128xf32>
    %c128 = arith.constant 128 : index
    %c0_23 = arith.constant 0 : index
    %27 = vector.load %arg2[%c128, %c0_23] : memref<1920x128xf32, #tpu.memory_space<vmem>>, vector<128x128xf32>
    %cst_24 = arith.constant dense<0.000000e+00> : vector<2x128xf32>
    %28 = tpu.matmul %1, %27, %cst_24 {dimension_numbers = #tpu.dot_dimension_numbers<[1], [0], [0], [1], [0, 0, 1, 1], [], []>} : vector<2x128xf32>, vector<128x128xf32>, vector<2x128xf32> -> vector<2x128xf32>
    %c256 = arith.constant 256 : index
    %c0_25 = arith.constant 0 : index
    %29 = vector.load %arg2[%c256, %c0_25] : memref<1920x128xf32, #tpu.memory_space<vmem>>, vector<128x128xf32>
    %cst_26 = arith.constant dense<0.000000e+00> : vector<2x128xf32>
    %30 = tpu.matmul %3, %29, %cst_26 {dimension_numbers = #tpu.dot_dimension_numbers<[1], [0], [0], [1], [0, 0, 1, 1], [], []>} : vector<2x128xf32>, vector<128x128xf32>, vector<2x128xf32> -> vector<2x128xf32>
    %31 = arith.addf %28, %30 : vector<2x128xf32>
    %c384 = arith.constant 384 : index
    %c0_27 = arith.constant 0 : index
    %32 = vector.load %arg2[%c384, %c0_27] : memref<1920x128xf32, #tpu.memory_space<vmem>>, vector<128x128xf32>
    %cst_28 = arith.constant dense<0.000000e+00> : vector<2x128xf32>
    %33 = tpu.matmul %5, %32, %cst_28 {dimension_numbers = #tpu.dot_dimension_numbers<[1], [0], [0], [1], [0, 0, 1, 1], [], []>} : vector<2x128xf32>, vector<128x128xf32>, vector<2x128xf32> -> vector<2x128xf32>
    %34 = arith.addf %31, %33 : vector<2x128xf32>
    %c512 = arith.constant 512 : index
    %c0_29 = arith.constant 0 : index
    %35 = vector.load %arg2[%c512, %c0_29] : memref<1920x128xf32, #tpu.memory_space<vmem>>, vector<128x128xf32>
    %cst_30 = arith.constant dense<0.000000e+00> : vector<2x128xf32>
    %36 = tpu.matmul %7, %35, %cst_30 {dimension_numbers = #tpu.dot_dimension_numbers<[1], [0], [0], [1], [0, 0, 1, 1], [], []>} : vector<2x128xf32>, vector<128x128xf32>, vector<2x128xf32> -> vector<2x128xf32>
    %37 = arith.addf %34, %36 : vector<2x128xf32>
    %38 = vector.broadcast %26 : vector<1x128xf32> to vector<2x128xf32>
    %39 = arith.addf %37, %38 : vector<2x128xf32>
    %40 = vector.extract_strided_slice %39 {offsets = [0, 0], sizes = [2, 32], strides = [1, 1]} : vector<2x128xf32> to vector<2x32xf32>
    %41 = vector.extract_strided_slice %39 {offsets = [0, 32], sizes = [2, 32], strides = [1, 1]} : vector<2x128xf32> to vector<2x32xf32>
    %42 = vector.extract_strided_slice %39 {offsets = [0, 64], sizes = [2, 32], strides = [1, 1]} : vector<2x128xf32> to vector<2x32xf32>
    %43 = vector.extract_strided_slice %39 {offsets = [0, 96], sizes = [2, 32], strides = [1, 1]} : vector<2x128xf32> to vector<2x32xf32>
    %c640 = arith.constant 640 : index
    %c0_31 = arith.constant 0 : index
    %44 = vector.load %arg2[%c640, %c0_31] : memref<1920x128xf32, #tpu.memory_space<vmem>>, vector<32x128xf32>
    %c2_32 = arith.constant 2 : index
    %c0_33 = arith.constant 0 : index
    %45 = vector.load %arg3[%c2_32, %c0_33] : memref<8x128xf32, #tpu.memory_space<vmem>>, vector<1x128xf32>
    %cst_34 = arith.constant dense<0.000000e+00> : vector<2x128xf32>
    %46 = tpu.matmul %40, %44, %cst_34 {dimension_numbers = #tpu.dot_dimension_numbers<[1], [0], [0], [1], [0, 0, 1, 1], [], []>} : vector<2x32xf32>, vector<32x128xf32>, vector<2x128xf32> -> vector<2x128xf32>
    %47 = vector.broadcast %45 : vector<1x128xf32> to vector<2x128xf32>
    %48 = arith.addf %46, %47 : vector<2x128xf32>
    %c0_35 = arith.constant 0 : index
    %c128_36 = arith.constant 128 : index
    %49 = vector.load %arg4[%c0_35, %c128_36] : memref<8x512xf32, #tpu.memory_space<vmem>>, vector<2x128xf32>
    tpu.vector_store %arg4[%c0_35, %c128_36], %48 {strides = array<i32>} : memref<8x512xf32, #tpu.memory_space<vmem>>, vector<2x128xf32>,
    %cst_37 = arith.constant dense<0.000000e+00> : vector<2x128xf32>
    %50 = tpu.matmul %41, %44, %cst_37 {dimension_numbers = #tpu.dot_dimension_numbers<[1], [0], [0], [1], [0, 0, 1, 1], [], []>} : vector<2x32xf32>, vector<32x128xf32>, vector<2x128xf32> -> vector<2x128xf32>
    %51 = vector.broadcast %45 : vector<1x128xf32> to vector<2x128xf32>
    %52 = arith.addf %50, %51 : vector<2x128xf32>
    %c2_38 = arith.constant 2 : index
    %c128_39 = arith.constant 128 : index
    %53 = vector.load %arg4[%c2_38, %c128_39] : memref<8x512xf32, #tpu.memory_space<vmem>>, vector<2x128xf32>
    tpu.vector_store %arg4[%c2_38, %c128_39], %52 {strides = array<i32>} : memref<8x512xf32, #tpu.memory_space<vmem>>, vector<2x128xf32>,
    %cst_40 = arith.constant dense<0.000000e+00> : vector<2x128xf32>
    %54 = tpu.matmul %42, %44, %cst_40 {dimension_numbers = #tpu.dot_dimension_numbers<[1], [0], [0], [1], [0, 0, 1, 1], [], []>} : vector<2x32xf32>, vector<32x128xf32>, vector<2x128xf32> -> vector<2x128xf32>
    %55 = vector.broadcast %45 : vector<1x128xf32> to vector<2x128xf32>
    %56 = arith.addf %54, %55 : vector<2x128xf32>
    %c4_41 = arith.constant 4 : index
    %c128_42 = arith.constant 128 : index
    %57 = vector.load %arg4[%c4_41, %c128_42] : memref<8x512xf32, #tpu.memory_space<vmem>>, vector<2x128xf32>
    tpu.vector_store %arg4[%c4_41, %c128_42], %56 {strides = array<i32>} : memref<8x512xf32, #tpu.memory_space<vmem>>, vector<2x128xf32>,
    %cst_43 = arith.constant dense<0.000000e+00> : vector<2x128xf32>
    %58 = tpu.matmul %43, %44, %cst_43 {dimension_numbers = #tpu.dot_dimension_numbers<[1], [0], [0], [1], [0, 0, 1, 1], [], []>} : vector<2x32xf32>, vector<32x128xf32>, vector<2x128xf32> -> vector<2x128xf32>
    %59 = vector.broadcast %45 : vector<1x128xf32> to vector<2x128xf32>
    %60 = arith.addf %58, %59 : vector<2x128xf32>
    %c6_44 = arith.constant 6 : index
    %c128_45 = arith.constant 128 : index
    %61 = vector.load %arg4[%c6_44, %c128_45] : memref<8x512xf32, #tpu.memory_space<vmem>>, vector<2x128xf32>
    tpu.vector_store %arg4[%c6_44, %c128_45], %60 {strides = array<i32>} : memref<8x512xf32, #tpu.memory_space<vmem>>, vector<2x128xf32>,
    %c3_46 = arith.constant 3 : index
    %c0_47 = arith.constant 0 : index
    %62 = vector.load %arg3[%c3_46, %c0_47] : memref<8x128xf32, #tpu.memory_space<vmem>>, vector<1x128xf32>
    %c768 = arith.constant 768 : index
    %c0_48 = arith.constant 0 : index
    %63 = vector.load %arg2[%c768, %c0_48] : memref<1920x128xf32, #tpu.memory_space<vmem>>, vector<32x128xf32>
    %cst_49 = arith.constant dense<0.000000e+00> : vector<2x128xf32>
    %64 = tpu.matmul %40, %63, %cst_49 {dimension_numbers = #tpu.dot_dimension_numbers<[1], [0], [0], [1], [0, 0, 1, 1], [], []>} : vector<2x32xf32>, vector<32x128xf32>, vector<2x128xf32> -> vector<2x128xf32>
    %c896 = arith.constant 896 : index
    %c0_50 = arith.constant 0 : index
    %65 = vector.load %arg2[%c896, %c0_50] : memref<1920x128xf32, #tpu.memory_space<vmem>>, vector<32x128xf32>
    %cst_51 = arith.constant dense<0.000000e+00> : vector<2x128xf32>
    %66 = tpu.matmul %41, %65, %cst_51 {dimension_numbers = #tpu.dot_dimension_numbers<[1], [0], [0], [1], [0, 0, 1, 1], [], []>} : vector<2x32xf32>, vector<32x128xf32>, vector<2x128xf32> -> vector<2x128xf32>
    %67 = arith.addf %64, %66 : vector<2x128xf32>
    %c1024 = arith.constant 1024 : index
    %c0_52 = arith.constant 0 : index
    %68 = vector.load %arg2[%c1024, %c0_52] : memref<1920x128xf32, #tpu.memory_space<vmem>>, vector<32x128xf32>
    %cst_53 = arith.constant dense<0.000000e+00> : vector<2x128xf32>
    %69 = tpu.matmul %42, %68, %cst_53 {dimension_numbers = #tpu.dot_dimension_numbers<[1], [0], [0], [1], [0, 0, 1, 1], [], []>} : vector<2x32xf32>, vector<32x128xf32>, vector<2x128xf32> -> vector<2x128xf32>
    %70 = arith.addf %67, %69 : vector<2x128xf32>
    %c1152 = arith.constant 1152 : index
    %c0_54 = arith.constant 0 : index
    %71 = vector.load %arg2[%c1152, %c0_54] : memref<1920x128xf32, #tpu.memory_space<vmem>>, vector<32x128xf32>
    %cst_55 = arith.constant dense<0.000000e+00> : vector<2x128xf32>
    %72 = tpu.matmul %43, %71, %cst_55 {dimension_numbers = #tpu.dot_dimension_numbers<[1], [0], [0], [1], [0, 0, 1, 1], [], []>} : vector<2x32xf32>, vector<32x128xf32>, vector<2x128xf32> -> vector<2x128xf32>
    %73 = arith.addf %70, %72 : vector<2x128xf32>
    %74 = vector.broadcast %62 : vector<1x128xf32> to vector<2x128xf32>
    %75 = arith.addf %73, %74 : vector<2x128xf32>
    %76 = vector.extract_strided_slice %75 {offsets = [0, 0], sizes = [2, 8], strides = [1, 1]} : vector<2x128xf32> to vector<2x8xf32>
    %77 = vector.extract_strided_slice %75 {offsets = [0, 8], sizes = [2, 8], strides = [1, 1]} : vector<2x128xf32> to vector<2x8xf32>
    %78 = vector.extract_strided_slice %75 {offsets = [0, 16], sizes = [2, 8], strides = [1, 1]} : vector<2x128xf32> to vector<2x8xf32>
    %79 = vector.extract_strided_slice %75 {offsets = [0, 24], sizes = [2, 8], strides = [1, 1]} : vector<2x128xf32> to vector<2x8xf32>
    %c1280 = arith.constant 1280 : index
    %c0_56 = arith.constant 0 : index
    %80 = vector.load %arg2[%c1280, %c0_56] : memref<1920x128xf32, #tpu.memory_space<vmem>>, vector<8x128xf32>
    %c4_57 = arith.constant 4 : index
    %c0_58 = arith.constant 0 : index
    %81 = vector.load %arg3[%c4_57, %c0_58] : memref<8x128xf32, #tpu.memory_space<vmem>>, vector<1x128xf32>
    %cst_59 = arith.constant dense<0.000000e+00> : vector<2x128xf32>
    %82 = tpu.matmul %76, %80, %cst_59 {dimension_numbers = #tpu.dot_dimension_numbers<[1], [0], [0], [1], [0, 0, 1, 1], [], []>} : vector<2x8xf32>, vector<8x128xf32>, vector<2x128xf32> -> vector<2x128xf32>
    %83 = vector.broadcast %81 : vector<1x128xf32> to vector<2x128xf32>
    %84 = arith.addf %82, %83 : vector<2x128xf32>
    %c0_60 = arith.constant 0 : index
    %c256_61 = arith.constant 256 : index
    %85 = vector.load %arg4[%c0_60, %c256_61] : memref<8x512xf32, #tpu.memory_space<vmem>>, vector<2x128xf32>
    tpu.vector_store %arg4[%c0_60, %c256_61], %84 {strides = array<i32>} : memref<8x512xf32, #tpu.memory_space<vmem>>, vector<2x128xf32>,
    %cst_62 = arith.constant dense<0.000000e+00> : vector<2x128xf32>
    %86 = tpu.matmul %77, %80, %cst_62 {dimension_numbers = #tpu.dot_dimension_numbers<[1], [0], [0], [1], [0, 0, 1, 1], [], []>} : vector<2x8xf32>, vector<8x128xf32>, vector<2x128xf32> -> vector<2x128xf32>
    %87 = vector.broadcast %81 : vector<1x128xf32> to vector<2x128xf32>
    %88 = arith.addf %86, %87 : vector<2x128xf32>
    %c2_63 = arith.constant 2 : index
    %c256_64 = arith.constant 256 : index
    %89 = vector.load %arg4[%c2_63, %c256_64] : memref<8x512xf32, #tpu.memory_space<vmem>>, vector<2x128xf32>
    tpu.vector_store %arg4[%c2_63, %c256_64], %88 {strides = array<i32>} : memref<8x512xf32, #tpu.memory_space<vmem>>, vector<2x128xf32>,
    %cst_65 = arith.constant dense<0.000000e+00> : vector<2x128xf32>
    %90 = tpu.matmul %78, %80, %cst_65 {dimension_numbers = #tpu.dot_dimension_numbers<[1], [0], [0], [1], [0, 0, 1, 1], [], []>} : vector<2x8xf32>, vector<8x128xf32>, vector<2x128xf32> -> vector<2x128xf32>
    %91 = vector.broadcast %81 : vector<1x128xf32> to vector<2x128xf32>
    %92 = arith.addf %90, %91 : vector<2x128xf32>
    %c4_66 = arith.constant 4 : index
    %c256_67 = arith.constant 256 : index
    %93 = vector.load %arg4[%c4_66, %c256_67] : memref<8x512xf32, #tpu.memory_space<vmem>>, vector<2x128xf32>
    tpu.vector_store %arg4[%c4_66, %c256_67], %92 {strides = array<i32>} : memref<8x512xf32, #tpu.memory_space<vmem>>, vector<2x128xf32>,
    %cst_68 = arith.constant dense<0.000000e+00> : vector<2x128xf32>
    %94 = tpu.matmul %79, %80, %cst_68 {dimension_numbers = #tpu.dot_dimension_numbers<[1], [0], [0], [1], [0, 0, 1, 1], [], []>} : vector<2x8xf32>, vector<8x128xf32>, vector<2x128xf32> -> vector<2x128xf32>
    %95 = vector.broadcast %81 : vector<1x128xf32> to vector<2x128xf32>
    %96 = arith.addf %94, %95 : vector<2x128xf32>
    %c6_69 = arith.constant 6 : index
    %c256_70 = arith.constant 256 : index
    %97 = vector.load %arg4[%c6_69, %c256_70] : memref<8x512xf32, #tpu.memory_space<vmem>>, vector<2x128xf32>
    tpu.vector_store %arg4[%c6_69, %c256_70], %96 {strides = array<i32>} : memref<8x512xf32, #tpu.memory_space<vmem>>, vector<2x128xf32>,
    %c5 = arith.constant 5 : index
    %c0_71 = arith.constant 0 : index
    %98 = vector.load %arg3[%c5, %c0_71] : memref<8x128xf32, #tpu.memory_space<vmem>>, vector<1x128xf32>
    %c1408 = arith.constant 1408 : index
    %c0_72 = arith.constant 0 : index
    %99 = vector.load %arg2[%c1408, %c0_72] : memref<1920x128xf32, #tpu.memory_space<vmem>>, vector<8x128xf32>
    %cst_73 = arith.constant dense<0.000000e+00> : vector<2x128xf32>
    %100 = tpu.matmul %76, %99, %cst_73 {dimension_numbers = #tpu.dot_dimension_numbers<[1], [0], [0], [1], [0, 0, 1, 1], [], []>} : vector<2x8xf32>, vector<8x128xf32>, vector<2x128xf32> -> vector<2x128xf32>
    %c1536 = arith.constant 1536 : index
    %c0_74 = arith.constant 0 : index
    %101 = vector.load %arg2[%c1536, %c0_74] : memref<1920x128xf32, #tpu.memory_space<vmem>>, vector<8x128xf32>
    %cst_75 = arith.constant dense<0.000000e+00> : vector<2x128xf32>
    %102 = tpu.matmul %77, %101, %cst_75 {dimension_numbers = #tpu.dot_dimension_numbers<[1], [0], [0], [1], [0, 0, 1, 1], [], []>} : vector<2x8xf32>, vector<8x128xf32>, vector<2x128xf32> -> vector<2x128xf32>
    %103 = arith.addf %100, %102 : vector<2x128xf32>
    %c1664 = arith.constant 1664 : index
    %c0_76 = arith.constant 0 : index
    %104 = vector.load %arg2[%c1664, %c0_76] : memref<1920x128xf32, #tpu.memory_space<vmem>>, vector<8x128xf32>
    %cst_77 = arith.constant dense<0.000000e+00> : vector<2x128xf32>
    %105 = tpu.matmul %78, %104, %cst_77 {dimension_numbers = #tpu.dot_dimension_numbers<[1], [0], [0], [1], [0, 0, 1, 1], [], []>} : vector<2x8xf32>, vector<8x128xf32>, vector<2x128xf32> -> vector<2x128xf32>
    %106 = arith.addf %103, %105 : vector<2x128xf32>
    %c1792 = arith.constant 1792 : index
    %c0_78 = arith.constant 0 : index
    %107 = vector.load %arg2[%c1792, %c0_78] : memref<1920x128xf32, #tpu.memory_space<vmem>>, vector<8x128xf32>
    %cst_79 = arith.constant dense<0.000000e+00> : vector<2x128xf32>
    %108 = tpu.matmul %79, %107, %cst_79 {dimension_numbers = #tpu.dot_dimension_numbers<[1], [0], [0], [1], [0, 0, 1, 1], [], []>} : vector<2x8xf32>, vector<8x128xf32>, vector<2x128xf32> -> vector<2x128xf32>
    %109 = arith.addf %106, %108 : vector<2x128xf32>
    %110 = vector.broadcast %98 : vector<1x128xf32> to vector<2x128xf32>
    %111 = arith.addf %109, %110 : vector<2x128xf32>
    %c0_80 = arith.constant 0 : index
    %c384_81 = arith.constant 384 : index
    %112 = vector.load %arg4[%c0_80, %c384_81] : memref<8x512xf32, #tpu.memory_space<vmem>>, vector<2x128xf32>
    tpu.vector_store %arg4[%c0_80, %c384_81], %111 {strides = array<i32>} : memref<8x512xf32, #tpu.memory_space<vmem>>, vector<2x128xf32>,
    return
  }
  func.func @transform_0(%arg0: i32) -> (i32, i32, i32) {
    %c0_i32 = arith.constant 0 : i32
    %c0_i32_0 = arith.constant 0 : i32
    %c0_i32_1 = arith.constant 0 : i32
    %c0_i32_2 = arith.constant 0 : i32
    return %c0_i32, %c0_i32_0, %c0_i32_1 : i32, i32, i32
  }
  func.func @transform_1(%arg0: i32) -> (i32, i32) {
    %c0_i32 = arith.constant 0 : i32
    %c0_i32_0 = arith.constant 0 : i32
    %c0_i32_1 = arith.constant 0 : i32
    return %c0_i32, %c0_i32_0 : i32, i32
  }
  func.func @transform_2(%arg0: i32) -> (i32, i32) {
    %c0_i32 = arith.constant 0 : i32
    %c0_i32_0 = arith.constant 0 : i32
    %c0_i32_1 = arith.constant 0 : i32
    return %c0_i32, %c0_i32_0 : i32, i32
  }
  func.func @transform_3(%arg0: i32) -> (i32, i32) {
    %c0_i32 = arith.constant 0 : i32
    %c0_i32_0 = arith.constant 0 : i32
    %c0_i32_1 = arith.constant 0 : i32
    return %c0_i32, %c0_i32_0 : i32, i32
  }
}

</mosaic_0001>

<llo_original>
// kernel: fancy_separator_forward.1
$region0: #{fancy_separator_forward.1}
  #allocation0 [shape = 'u32[]', space=smem, size = 0x4, offset = 0x4, fixed_abs, tag = 'smem constant byte address 0x4 - core index']
  #allocation1 [shape = 'u32[144,128]{1,0:T(1,128)}', space=vmem, size = 0x12000, scoped, tag = 'internal scratch']
  %s0 = inlined_call_operand.vmem [shape: f32[4,2,128], index: 0, kind: input, shape index: {}]
  %s1 = inlined_call_operand.vmem [shape: f32[1920,128], index: 1, kind: input, shape index: {}]
  %s2 = inlined_call_operand.hbm [shape: f32[8,128], index: 2, kind: input, shape index: {}]
  %s3 = inlined_call_operand.vmem [shape: f32[8,512], index: 3, kind: output, shape index: {}]
  %s4 = sld [smem:[#allocation0]]
  $region26: #{fancy_separator_forward.1} parent=0
    _
  %s6 = ssub.s32 1, %s4
  %s7 = scalar_select 0, %s6, %s4
  $region1: #{fancy_separator_forward.1} parent=0
    #allocation2 [shape = 'u8[4096]{0}', space=vmem, size = 0x1000, scoped, tag = 'input window, operand 2, single buffered']
    #allocation3 [shape = 's32[1]{0}', space=sflag, size = 0x4, scoped, tag = 'scoped memory for fancy_separator_forward.1']
    %8 = vsyncpa [#allocation3], 0
    // Predicated region
    $region2: #{fancy_separator_forward.1} parent=1 // pred_check
      _
    $region3: #{fancy_separator_forward.1} parent=1 // pred_check_branch
      %10 = sbr.rel (0) target = $region5
    $region4: #{fancy_separator_forward.1} parent=1 // pred_region
      _
    $region5: #{fancy_separator_forward.1} parent=1 // pred_fallthru
      _
    // Predicated region
    $region6: #{fancy_separator_forward.1} parent=1 // pred_check
      _
    $region7: #{fancy_separator_forward.1} parent=1 // pred_check_branch
      %12 = sbr.rel (0) target = $region9
    $region8: #{fancy_separator_forward.1} parent=1 // pred_region
      _
    $region9: #{fancy_separator_forward.1} parent=1 // pred_fallthru
      _
    // Predicated region
    $region10: #{fancy_separator_forward.1} parent=1 // pred_check
      _
    $region11: #{fancy_separator_forward.1} parent=1 // pred_check_branch
      %14 = sbr.rel (0) target = $region13
    $region12: #{fancy_separator_forward.1} parent=1 // pred_region
      %s16 = ssub.s32 128, 128
      %17 = vsyncadd [#allocation3], %s16
      %s19 = sshll.u32 [#allocation2], 4
      %s20 = int_to_ptr.vmem [resolvable:$true] %s19
      %22 = dma.hbm_to_vmem [thread:$0]  %s2, 128, %s20, [#allocation3]
    $region13: #{fancy_separator_forward.1} parent=1 // pred_fallthru
      _
    // Predicated region
    $region14: #{fancy_separator_forward.1} parent=1 // pred_check
      _
    $region15: #{fancy_separator_forward.1} parent=1 // pred_check_branch
      %24 = sbr.rel (0) target = $region17
    $region16: #{fancy_separator_forward.1} parent=1 // pred_region
      %25 = dma.done [#allocation3], 128
    $region17: #{fancy_separator_forward.1} parent=1 // pred_fallthru
      _
    %v26 = vld [vmem:[%s0] sm:$0x3]
    %s27 = scalar_lea.vmem %s0, 2
    %v28 = vld [vmem:[%s27] sm:$0x3]
    %s29 = scalar_lea.vmem %s0, 4
    %v30 = vld [vmem:[%s29] sm:$0x3]
    %s31 = scalar_lea.vmem %s0, 6
    %v32 = vld [vmem:[%s31] sm:$0x3]
    %v33 = vld [vmem:[%s1] sm:$0xff]
    %v34 = vld [vmem:[%s1 + $0x8] sm:$0xff]
    %v35 = vld [vmem:[%s1 + $0x10] sm:$0xff]
    %v36 = vld [vmem:[%s1 + $0x18] sm:$0xff]
    %v37 = vld [vmem:[%s1 + $0x20] sm:$0xff]
    %v38 = vld [vmem:[%s1 + $0x28] sm:$0xff]
    %v39 = vld [vmem:[%s1 + $0x30] sm:$0xff]
    %v40 = vld [vmem:[%s1 + $0x38] sm:$0xff]
    %v41 = vld [vmem:[%s1 + $0x40] sm:$0xff]
    %v42 = vld [vmem:[%s1 + $0x48] sm:$0xff]
    %v43 = vld [vmem:[%s1 + $0x50] sm:$0xff]
    %v44 = vld [vmem:[%s1 + $0x58] sm:$0xff]
    %v45 = vld [vmem:[%s1 + $0x60] sm:$0xff]
    %v46 = vld [vmem:[%s1 + $0x68] sm:$0xff]
    %v47 = vld [vmem:[%s1 + $0x70] sm:$0xff]
    %v48 = vld [vmem:[%s1 + $0x78] sm:$0xff]
    %v49 = vld [vmem:[#allocation2] sm:$0x1]
    %v50 = vlaneseq
    %v51 = vshrl.u32 %v50, 7
    %v52 = vsub.s32 0, %v51
    %v53 = vrot.slane %v49, %v52
    %54 = vmatprep.subr.mxu0 0.0
    %55 = vmatpush1.msra.mxu0 %v33
    %56 = vmatprep.subr.mxu0 0.0
    %57 = vmatpush1.msra.mxu0 %v34
    %58 = vmatprep.subr.mxu0 0.0
    %59 = vmatpush1.msra.mxu0 %v35
    %60 = vmatprep.subr.mxu0 0.0
    %61 = vmatpush1.msra.mxu0 %v36
    %62 = vmatprep.subr.mxu0 0.0
    %63 = vmatpush1.msra.mxu0 %v37
    %64 = vmatprep.subr.mxu0 0.0
    %65 = vmatpush1.msra.mxu0 %v38
    %66 = vmatprep.subr.mxu0 0.0
    %67 = vmatpush1.msra.mxu0 %v39
    %68 = vmatprep.subr.mxu0 0.0
    %69 = vmatpush1.msra.mxu0 %v40
    %70 = vmatprep.subr.mxu0 0.0
    %71 = vmatpush1.msra.mxu0 %v41
    %72 = vmatprep.subr.mxu0 0.0
    %73 = vmatpush1.msra.mxu0 %v42
    %74 = vmatprep.subr.mxu0 0.0
    %75 = vmatpush1.msra.mxu0 %v43
    %76 = vmatprep.subr.mxu0 0.0
    %77 = vmatpush1.msra.mxu0 %v44
    %78 = vmatprep.subr.mxu0 0.0
    %79 = vmatpush1.msra.mxu0 %v45
    %80 = vmatprep.subr.mxu0 0.0
    %81 = vmatpush1.msra.mxu0 %v46
    %82 = vmatprep.subr.mxu0 0.0
    %83 = vmatpush1.msra.mxu0 %v47
    %84 = vmatprep.subr.mxu0 0.0
    %85 = vmatpush1.msra.mxu0 %v48
    %86 = vmatprep.subr.mxu0 0.0
    %87 = vmatpush1.msra.mxu0 0.0
    %88 = vmatprep.subr.mxu0 0.0
    %89 = vmatpush1.msra.mxu0 0.0
    %90 = vmatprep.subr.mxu0 0.0
    %91 = vmatpush1.msra.mxu0 0.0
    %92 = vmatprep.subr.mxu0 0.0
    %93 = vmatpush1.msra.mxu0 0.0
    %94 = vmatprep.subr.mxu0 0.0
    %95 = vmatpush1.msra.mxu0 0.0
    %96 = vmatprep.subr.mxu0 0.0
    %97 = vmatpush1.msra.mxu0 0.0
    %98 = vmatprep.subr.mxu0 0.0
    %99 = vmatpush1.msra.mxu0 0.0
    %100 = vmatprep.subr.mxu0 0.0
    %101 = vmatpush1.msra.mxu0 0.0
    %102 = vmatprep.subr.mxu0 0.0
    %103 = vmatpush1.msra.mxu0 0.0
    %104 = vmatprep.subr.mxu0 0.0
    %105 = vmatpush1.msra.mxu0 0.0
    %106 = vmatprep.subr.mxu0 0.0
    %107 = vmatpush1.msra.mxu0 0.0
    %108 = vmatprep.subr.mxu0 0.0
    %109 = vmatpush1.msra.mxu0 0.0
    %110 = vmatprep.subr.mxu0 0.0
    %111 = vmatpush1.msra.mxu0 0.0
    %112 = vmatprep.subr.mxu0 0.0
    %113 = vmatpush1.msra.mxu0 0.0
    %114 = vmatprep.subr.mxu0 0.0
    %115 = vmatpush1.msra.mxu0 0.0
    %116 = vmatprep.subr.mxu0 0.0
    %117 = vmatpush1.msra.mxu0 0.0
    %118 = vmatprep.mubr.f32.mxu0 0.0
    %119 = vmatmul.mubr.f32.gmra.mrb[0].mxu0 %v26
    %v120 = vpop.f32.mrb[0].mxu0
    %v121 = vadd.f32 %v53, %v120
    %v122 = vpop.f32.mrb[0].mxu0
    %123 = vdwg.mxu0
    %124 = vst [vmem:[%s3] sm:$0x3] %v121
    %125 = vmatprep.subr.mxu0 0.0
    %126 = vmatpush1.msra.mxu0 %v33
    %127 = vmatprep.subr.mxu0 0.0
    %128 = vmatpush1.msra.mxu0 %v34
    %129 = vmatprep.subr.mxu0 0.0
    %130 = vmatpush1.msra.mxu0 %v35
    %131 = vmatprep.subr.mxu0 0.0
    %132 = vmatpush1.msra.mxu0 %v36
    %133 = vmatprep.subr.mxu0 0.0
    %134 = vmatpush1.msra.mxu0 %v37
    %135 = vmatprep.subr.mxu0 0.0
    %136 = vmatpush1.msra.mxu0 %v38
    %137 = vmatprep.subr.mxu0 0.0
    %138 = vmatpush1.msra.mxu0 %v39
    %139 = vmatprep.subr.mxu0 0.0
    %140 = vmatpush1.msra.mxu0 %v40
    %141 = vmatprep.subr.mxu0 0.0
    %142 = vmatpush1.msra.mxu0 %v41
    %143 = vmatprep.subr.mxu0 0.0
    %144 = vmatpush1.msra.mxu0 %v42
    %145 = vmatprep.subr.mxu0 0.0
    %146 = vmatpush1.msra.mxu0 %v43
    %147 = vmatprep.subr.mxu0 0.0
    %148 = vmatpush1.msra.mxu0 %v44
    %149 = vmatprep.subr.mxu0 0.0
    %150 = vmatpush1.msra.mxu0 %v45
    %151 = vmatprep.subr.mxu0 0.0
    %152 = vmatpush1.msra.mxu0 %v46
    %153 = vmatprep.subr.mxu0 0.0
    %154 = vmatpush1.msra.mxu0 %v47
    %155 = vmatprep.subr.mxu0 0.0
    %156 = vmatpush1.msra.mxu0 %v48
    %157 = vmatprep.subr.mxu0 0.0
    %158 = vmatpush1.msra.mxu0 0.0
    %159 = vmatprep.subr.mxu0 0.0
    %160 = vmatpush1.msra.mxu0 0.0
    %161 = vmatprep.subr.mxu0 0.0
    %162 = vmatpush1.msra.mxu0 0.0
    %163 = vmatprep.subr.mxu0 0.0
    %164 = vmatpush1.msra.mxu0 0.0
    %165 = vmatprep.subr.mxu0 0.0
    %166 = vmatpush1.msra.mxu0 0.0
    %167 = vmatprep.subr.mxu0 0.0
    %168 = vmatpush1.msra.mxu0 0.0
    %169 = vmatprep.subr.mxu0 0.0
    %170 = vmatpush1.msra.mxu0 0.0
    %171 = vmatprep.subr.mxu0 0.0
    %172 = vmatpush1.msra.mxu0 0.0
    %173 = vmatprep.subr.mxu0 0.0
    %174 = vmatpush1.msra.mxu0 0.0
    %175 = vmatprep.subr.mxu0 0.0
    %176 = vmatpush1.msra.mxu0 0.0
    %177 = vmatprep.subr.mxu0 0.0
    %178 = vmatpush1.msra.mxu0 0.0
    %179 = vmatprep.subr.mxu0 0.0
    %180 = vmatpush1.msra.mxu0 0.0
    %181 = vmatprep.subr.mxu0 0.0
    %182 = vmatpush1.msra.mxu0 0.0
    %183 = vmatprep.subr.mxu0 0.0
    %184 = vmatpush1.msra.mxu0 0.0
    %185 = vmatprep.subr.mxu0 0.0
    %186 = vmatpush1.msra.mxu0 0.0
    %187 = vmatprep.subr.mxu0 0.0
    %188 = vmatpush1.msra.mxu0 0.0
    %189 = vmatprep.mubr.f32.mxu0 0.0
    %190 = vmatmul.mubr.f32.gmra.mrb[0].mxu0 %v28
    %v191 = vpop.f32.mrb[0].mxu0
    %v192 = vadd.f32 %v53, %v191
    %v193 = vpop.f32.mrb[0].mxu0
    %194 = vdwg.mxu0
    %v196 = vrot.slane %v192, 6
    %198 = vst [vmem:[%s3] sm:$0xc] %v196
    %199 = vmatprep.subr.mxu0 0.0
    %200 = vmatpush1.msra.mxu0 %v33
    %201 = vmatprep.subr.mxu0 0.0
    %202 = vmatpush1.msra.mxu0 %v34
    %203 = vmatprep.subr.mxu0 0.0
    %204 = vmatpush1.msra.mxu0 %v35
    %205 = vmatprep.subr.mxu0 0.0
    %206 = vmatpush1.msra.mxu0 %v36
    %207 = vmatprep.subr.mxu0 0.0
    %208 = vmatpush1.msra.mxu0 %v37
    %209 = vmatprep.subr.mxu0 0.0
    %210 = vmatpush1.msra.mxu0 %v38
    %211 = vmatprep.subr.mxu0 0.0
    %212 = vmatpush1.msra.mxu0 %v39
    %213 = vmatprep.subr.mxu0 0.0
    %214 = vmatpush1.msra.mxu0 %v40
    %215 = vmatprep.subr.mxu0 0.0
    %216 = vmatpush1.msra.mxu0 %v41
    %217 = vmatprep.subr.mxu0 0.0
    %218 = vmatpush1.msra.mxu0 %v42
    %219 = vmatprep.subr.mxu0 0.0
    %220 = vmatpush1.msra.mxu0 %v43
    %221 = vmatprep.subr.mxu0 0.0
    %222 = vmatpush1.msra.mxu0 %v44
    %223 = vmatprep.subr.mxu0 0.0
    %224 = vmatpush1.msra.mxu0 %v45
    %225 = vmatprep.subr.mxu0 0.0
    %226 = vmatpush1.msra.mxu0 %v46
    %227 = vmatprep.subr.mxu0 0.0
    %228 = vmatpush1.msra.mxu0 %v47
    %229 = vmatprep.subr.mxu0 0.0
    %230 = vmatpush1.msra.mxu0 %v48
    %231 = vmatprep.subr.mxu0 0.0
    %232 = vmatpush1.msra.mxu0 0.0
    %233 = vmatprep.subr.mxu0 0.0
    %234 = vmatpush1.msra.mxu0 0.0
    %235 = vmatprep.subr.mxu0 0.0
    %236 = vmatpush1.msra.mxu0 0.0
    %237 = vmatprep.subr.mxu0 0.0
    %238 = vmatpush1.msra.mxu0 0.0
    %239 = vmatprep.subr.mxu0 0.0
    %240 = vmatpush1.msra.mxu0 0.0
    %241 = vmatprep.subr.mxu0 0.0
    %242 = vmatpush1.msra.mxu0 0.0
    %243 = vmatprep.subr.mxu0 0.0
    %244 = vmatpush1.msra.mxu0 0.0
    %245 = vmatprep.subr.mxu0 0.0
    %246 = vmatpush1.msra.mxu0 0.0
    %247 = vmatprep.subr.mxu0 0.0
    %248 = vmatpush1.msra.mxu0 0.0
    %249 = vmatprep.subr.mxu0 0.0
    %250 = vmatpush1.msra.mxu0 0.0
    %251 = vmatprep.subr.mxu0 0.0
    %252 = vmatpush1.msra.mxu0 0.0
    %253 = vmatprep.subr.mxu0 0.0
    %254 = vmatpush1.msra.mxu0 0.0
    %255 = vmatprep.subr.mxu0 0.0
    %256 = vmatpush1.msra.mxu0 0.0
    %257 = vmatprep.subr.mxu0 0.0
    %258 = vmatpush1.msra.mxu0 0.0
    %259 = vmatprep.subr.mxu0 0.0
    %260 = vmatpush1.msra.mxu0 0.0
    %261 = vmatprep.subr.mxu0 0.0
    %262 = vmatpush1.msra.mxu0 0.0
    %263 = vmatprep.mubr.f32.mxu0 0.0
    %264 = vmatmul.mubr.f32.gmra.mrb[0].mxu0 %v30
    %v265 = vpop.f32.mrb[0].mxu0
    %v266 = vadd.f32 %v53, %v265
    %v267 = vpop.f32.mrb[0].mxu0
    %268 = vdwg.mxu0
    %v270 = vrot.slane %v266, 4
    %272 = vst [vmem:[%s3] sm:$0x30] %v270
    %273 = vmatprep.subr.mxu0 0.0
    %274 = vmatpush1.msra.mxu0 %v33
    %275 = vmatprep.subr.mxu0 0.0
    %276 = vmatpush1.msra.mxu0 %v34
    %277 = vmatprep.subr.mxu0 0.0
    %278 = vmatpush1.msra.mxu0 %v35
    %279 = vmatprep.subr.mxu0 0.0
    %280 = vmatpush1.msra.mxu0 %v36
    %281 = vmatprep.subr.mxu0 0.0
    %282 = vmatpush1.msra.mxu0 %v37
    %283 = vmatprep.subr.mxu0 0.0
    %284 = vmatpush1.msra.mxu0 %v38
    %285 = vmatprep.subr.mxu0 0.0
    %286 = vmatpush1.msra.mxu0 %v39
    %287 = vmatprep.subr.mxu0 0.0
    %288 = vmatpush1.msra.mxu0 %v40
    %289 = vmatprep.subr.mxu0 0.0
    %290 = vmatpush1.msra.mxu0 %v41
    %291 = vmatprep.subr.mxu0 0.0
    %292 = vmatpush1.msra.mxu0 %v42
    %293 = vmatprep.subr.mxu0 0.0
    %294 = vmatpush1.msra.mxu0 %v43
    %295 = vmatprep.subr.mxu0 0.0
    %296 = vmatpush1.msra.mxu0 %v44
    %297 = vmatprep.subr.mxu0 0.0
    %298 = vmatpush1.msra.mxu0 %v45
    %299 = vmatprep.subr.mxu0 0.0
    %300 = vmatpush1.msra.mxu0 %v46
    %301 = vmatprep.subr.mxu0 0.0
    %302 = vmatpush1.msra.mxu0 %v47
    %303 = vmatprep.subr.mxu0 0.0
    %304 = vmatpush1.msra.mxu0 %v48
    %305 = vmatprep.subr.mxu0 0.0
    %306 = vmatpush1.msra.mxu0 0.0
    %307 = vmatprep.subr.mxu0 0.0
    %308 = vmatpush1.msra.mxu0 0.0
    %309 = vmatprep.subr.mxu0 0.0
    %310 = vmatpush1.msra.mxu0 0.0
    %311 = vmatprep.subr.mxu0 0.0
    %312 = vmatpush1.msra.mxu0 0.0
    %313 = vmatprep.subr.mxu0 0.0
    %314 = vmatpush1.msra.mxu0 0.0
    %315 = vmatprep.subr.mxu0 0.0
    %316 = vmatpush1.msra.mxu0 0.0
    %317 = vmatprep.subr.mxu0 0.0
    %318 = vmatpush1.msra.mxu0 0.0
    %319 = vmatprep.subr.mxu0 0.0
    %320 = vmatpush1.msra.mxu0 0.0
    %321 = vmatprep.subr.mxu0 0.0
    %322 = vmatpush1.msra.mxu0 0.0
    %323 = vmatprep.subr.mxu0 0.0
    %324 = vmatpush1.msra.mxu0 0.0
    %325 = vmatprep.subr.mxu0 0.0
    %326 = vmatpush1.msra.mxu0 0.0
    %327 = vmatprep.subr.mxu0 0.0
    %328 = vmatpush1.msra.mxu0 0.0
    %329 = vmatprep.subr.mxu0 0.0
    %330 = vmatpush1.msra.mxu0 0.0
    %331 = vmatprep.subr.mxu0 0.0
    %332 = vmatpush1.msra.mxu0 0.0
    %333 = vmatprep.subr.mxu0 0.0
    %334 = vmatpush1.msra.mxu0 0.0
    %335 = vmatprep.subr.mxu0 0.0
    %336 = vmatpush1.msra.mxu0 0.0
    %337 = vmatprep.mubr.f32.mxu0 0.0
    %338 = vmatmul.mubr.f32.gmra.mrb[0].mxu0 %v32
    %v339 = vpop.f32.mrb[0].mxu0
    %v340 = vadd.f32 %v53, %v339
    %v341 = vpop.f32.mrb[0].mxu0
    %342 = vdwg.mxu0
    %v344 = vrot.slane %v340, 2
    %346 = vst [vmem:[%s3] sm:$0xc0] %v344
    %v347 = vld [vmem:[#allocation2 + $0x1] sm:$0x1]
    %v348 = vld [vmem:[%s1 + $0x80] sm:$0xff]
    %v349 = vld [vmem:[%s1 + $0x88] sm:$0xff]
    %v350 = vld [vmem:[%s1 + $0x90] sm:$0xff]
    %v351 = vld [vmem:[%s1 + $0x98] sm:$0xff]
    %v352 = vld [vmem:[%s1 + $0xa0] sm:$0xff]
    %v353 = vld [vmem:[%s1 + $0xa8] sm:$0xff]
    %v354 = vld [vmem:[%s1 + $0xb0] sm:$0xff]
    %v355 = vld [vmem:[%s1 + $0xb8] sm:$0xff]
    %v356 = vld [vmem:[%s1 + $0xc0] sm:$0xff]
    %v357 = vld [vmem:[%s1 + $0xc8] sm:$0xff]
    %v358 = vld [vmem:[%s1 + $0xd0] sm:$0xff]
    %v359 = vld [vmem:[%s1 + $0xd8] sm:$0xff]
    %v360 = vld [vmem:[%s1 + $0xe0] sm:$0xff]
    %v361 = vld [vmem:[%s1 + $0xe8] sm:$0xff]
    %v362 = vld [vmem:[%s1 + $0xf0] sm:$0xff]
    %v363 = vld [vmem:[%s1 + $0xf8] sm:$0xff]
    %v364 = vld [vmem:[%s1 + $0x100] sm:$0xff]
    %v365 = vld [vmem:[%s1 + $0x108] sm:$0xff]
    %v366 = vld [vmem:[%s1 + $0x110] sm:$0xff]
    %v367 = vld [vmem:[%s1 + $0x118] sm:$0xff]
    %v368 = vld [vmem:[%s1 + $0x120] sm:$0xff]
    %v369 = vld [vmem:[%s1 + $0x128] sm:$0xff]
    %v370 = vld [vmem:[%s1 + $0x130] sm:$0xff]
    %v371 = vld [vmem:[%s1 + $0x138] sm:$0xff]
    %v372 = vld [vmem:[%s1 + $0x140] sm:$0xff]
    %v373 = vld [vmem:[%s1 + $0x148] sm:$0xff]
    %v374 = vld [vmem:[%s1 + $0x150] sm:$0xff]
    %v375 = vld [vmem:[%s1 + $0x158] sm:$0xff]
    %v376 = vld [vmem:[%s1 + $0x160] sm:$0xff]
    %v377 = vld [vmem:[%s1 + $0x168] sm:$0xff]
    %v378 = vld [vmem:[%s1 + $0x170] sm:$0xff]
    %v379 = vld [vmem:[%s1 + $0x178] sm:$0xff]
    %380 = vmatprep.subr.mxu0 0.0
    %381 = vmatpush1.msra.mxu0 %v364
    %382 = vmatprep.subr.mxu0 0.0
    %383 = vmatpush1.msra.mxu0 %v365
    %384 = vmatprep.subr.mxu0 0.0
    %385 = vmatpush1.msra.mxu0 %v366
    %386 = vmatprep.subr.mxu0 0.0
    %387 = vmatpush1.msra.mxu0 %v367
    %388 = vmatprep.subr.mxu0 0.0
    %389 = vmatpush1.msra.mxu0 %v368
    %390 = vmatprep.subr.mxu0 0.0
    %391 = vmatpush1.msra.mxu0 %v369
    %392 = vmatprep.subr.mxu0 0.0
    %393 = vmatpush1.msra.mxu0 %v370
    %394 = vmatprep.subr.mxu0 0.0
    %395 = vmatpush1.msra.mxu0 %v371
    %396 = vmatprep.subr.mxu0 0.0
    %397 = vmatpush1.msra.mxu0 %v372
    %398 = vmatprep.subr.mxu0 0.0
    %399 = vmatpush1.msra.mxu0 %v373
    %400 = vmatprep.subr.mxu0 0.0
    %401 = vmatpush1.msra.mxu0 %v374
    %402 = vmatprep.subr.mxu0 0.0
    %403 = vmatpush1.msra.mxu0 %v375
    %404 = vmatprep.subr.mxu0 0.0
    %405 = vmatpush1.msra.mxu0 %v376
    %406 = vmatprep.subr.mxu0 0.0
    %407 = vmatpush1.msra.mxu0 %v377
    %408 = vmatprep.subr.mxu0 0.0
    %409 = vmatpush1.msra.mxu0 %v378
    %410 = vmatprep.subr.mxu0 0.0
    %411 = vmatpush1.msra.mxu0 %v379
    %412 = vmatprep.subr.mxu0 0.0
    %413 = vmatpush1.msra.mxu0 0.0
    %414 = vmatprep.subr.mxu0 0.0
    %415 = vmatpush1.msra.mxu0 0.0
    %416 = vmatprep.subr.mxu0 0.0
    %417 = vmatpush1.msra.mxu0 0.0
    %418 = vmatprep.subr.mxu0 0.0
    %419 = vmatpush1.msra.mxu0 0.0
    %420 = vmatprep.subr.mxu0 0.0
    %421 = vmatpush1.msra.mxu0 0.0
    %422 = vmatprep.subr.mxu0 0.0
    %423 = vmatpush1.msra.mxu0 0.0
    %424 = vmatprep.subr.mxu0 0.0
    %425 = vmatpush1.msra.mxu0 0.0
    %426 = vmatprep.subr.mxu0 0.0
    %427 = vmatpush1.msra.mxu0 0.0
    %428 = vmatprep.subr.mxu0 0.0
    %429 = vmatpush1.msra.mxu0 0.0
    %430 = vmatprep.subr.mxu0 0.0
    %431 = vmatpush1.msra.mxu0 0.0
    %432 = vmatprep.subr.mxu0 0.0
    %433 = vmatpush1.msra.mxu0 0.0
    %434 = vmatprep.subr.mxu0 0.0
    %435 = vmatpush1.msra.mxu0 0.0
    %436 = vmatprep.subr.mxu0 0.0
    %437 = vmatpush1.msra.mxu0 0.0
    %438 = vmatprep.subr.mxu0 0.0
    %439 = vmatpush1.msra.mxu0 0.0
    %440 = vmatprep.subr.mxu0 0.0
    %441 = vmatpush1.msra.mxu0 0.0
    %442 = vmatprep.subr.mxu0 0.0
    %443 = vmatpush1.msra.mxu0 0.0
    %444 = vmatprep.mubr.f32.mxu0 0.0
    %445 = vmatmul.mubr.f32.gmra.mrb[0].mxu0 %v28
    %v446 = vpop.f32.mrb[0].mxu0
    %v447 = vadd.f32 0.0, %v446
    %v448 = vpop.f32.mrb[0].mxu0
    %449 = vdwg.mxu0
    %450 = vmatprep.subr.mxu0 0.0
    %451 = vmatpush1.msra.mxu0 %v348
    %452 = vmatprep.subr.mxu0 0.0
    %453 = vmatpush1.msra.mxu0 %v349
    %454 = vmatprep.subr.mxu0 0.0
    %455 = vmatpush1.msra.mxu0 %v350
    %456 = vmatprep.subr.mxu0 0.0
    %457 = vmatpush1.msra.mxu0 %v351
    %458 = vmatprep.subr.mxu0 0.0
    %459 = vmatpush1.msra.mxu0 %v352
    %460 = vmatprep.subr.mxu0 0.0
    %461 = vmatpush1.msra.mxu0 %v353
    %462 = vmatprep.subr.mxu0 0.0
    %463 = vmatpush1.msra.mxu0 %v354
    %464 = vmatprep.subr.mxu0 0.0
    %465 = vmatpush1.msra.mxu0 %v355
    %466 = vmatprep.subr.mxu0 0.0
    %467 = vmatpush1.msra.mxu0 %v356
    %468 = vmatprep.subr.mxu0 0.0
    %469 = vmatpush1.msra.mxu0 %v357
    %470 = vmatprep.subr.mxu0 0.0
    %471 = vmatpush1.msra.mxu0 %v358
    %472 = vmatprep.subr.mxu0 0.0
    %473 = vmatpush1.msra.mxu0 %v359
    %474 = vmatprep.subr.mxu0 0.0
    %475 = vmatpush1.msra.mxu0 %v360
    %476 = vmatprep.subr.mxu0 0.0
    %477 = vmatpush1.msra.mxu0 %v361
    %478 = vmatprep.subr.mxu0 0.0
    %479 = vmatpush1.msra.mxu0 %v362
    %480 = vmatprep.subr.mxu0 0.0
    %481 = vmatpush1.msra.mxu0 %v363
    %482 = vmatprep.subr.mxu0 0.0
    %483 = vmatpush1.msra.mxu0 0.0
    %484 = vmatprep.subr.mxu0 0.0
    %485 = vmatpush1.msra.mxu0 0.0
    %486 = vmatprep.subr.mxu0 0.0
    %487 = vmatpush1.msra.mxu0 0.0
    %488 = vmatprep.subr.mxu0 0.0
    %489 = vmatpush1.msra.mxu0 0.0
    %490 = vmatprep.subr.mxu0 0.0
    %491 = vmatpush1.msra.mxu0 0.0
    %492 = vmatprep.subr.mxu0 0.0
    %493 = vmatpush1.msra.mxu0 0.0
    %494 = vmatprep.subr.mxu0 0.0
    %495 = vmatpush1.msra.mxu0 0.0
    %496 = vmatprep.subr.mxu0 0.0
    %497 = vmatpush1.msra.mxu0 0.0
    %498 = vmatprep.subr.mxu0 0.0
    %499 = vmatpush1.msra.mxu0 0.0
    %500 = vmatprep.subr.mxu0 0.0
    %501 = vmatpush1.msra.mxu0 0.0
    %502 = vmatprep.subr.mxu0 0.0
    %503 = vmatpush1.msra.mxu0 0.0
    %504 = vmatprep.subr.mxu0 0.0
    %505 = vmatpush1.msra.mxu0 0.0
    %506 = vmatprep.subr.mxu0 0.0
    %507 = vmatpush1.msra.mxu0 0.0
    %508 = vmatprep.subr.mxu0 0.0
    %509 = vmatpush1.msra.mxu0 0.0
    %510 = vmatprep.subr.mxu0 0.0
    %511 = vmatpush1.msra.mxu0 0.0
    %512 = vmatprep.subr.mxu0 0.0
    %513 = vmatpush1.msra.mxu0 0.0
    %514 = vmatprep.mubr.f32.mxu0 0.0
    %515 = vmatmul.mubr.f32.gmra.mrb[0].mxu0 %v26
    %v516 = vpop.f32.mrb[0].mxu0
    %v517 = vadd.f32 %v447, %v516
    %v518 = vpop.f32.mrb[0].mxu0
    %519 = vdwg.mxu0
    %v520 = vld [vmem:[%s1 + $0x180] sm:$0xff]
    %v521 = vld [vmem:[%s1 + $0x188] sm:$0xff]
    %v522 = vld [vmem:[%s1 + $0x190] sm:$0xff]
    %v523 = vld [vmem:[%s1 + $0x198] sm:$0xff]
    %v524 = vld [vmem:[%s1 + $0x1a0] sm:$0xff]
    %v525 = vld [vmem:[%s1 + $0x1a8] sm:$0xff]
    %v526 = vld [vmem:[%s1 + $0x1b0] sm:$0xff]
    %v527 = vld [vmem:[%s1 + $0x1b8] sm:$0xff]
    %v528 = vld [vmem:[%s1 + $0x1c0] sm:$0xff]
    %v529 = vld [vmem:[%s1 + $0x1c8] sm:$0xff]
    %v530 = vld [vmem:[%s1 + $0x1d0] sm:$0xff]
    %v531 = vld [vmem:[%s1 + $0x1d8] sm:$0xff]
    %v532 = vld [vmem:[%s1 + $0x1e0] sm:$0xff]
    %v533 = vld [vmem:[%s1 + $0x1e8] sm:$0xff]
    %v534 = vld [vmem:[%s1 + $0x1f0] sm:$0xff]
    %v535 = vld [vmem:[%s1 + $0x1f8] sm:$0xff]
    %536 = vmatprep.subr.mxu0 0.0
    %537 = vmatpush1.msra.mxu0 %v520
    %538 = vmatprep.subr.mxu0 0.0
    %539 = vmatpush1.msra.mxu0 %v521
    %540 = vmatprep.subr.mxu0 0.0
    %541 = vmatpush1.msra.mxu0 %v522
    %542 = vmatprep.subr.mxu0 0.0
    %543 = vmatpush1.msra.mxu0 %v523
    %544 = vmatprep.subr.mxu0 0.0
    %545 = vmatpush1.msra.mxu0 %v524
    %546 = vmatprep.subr.mxu0 0.0
    %547 = vmatpush1.msra.mxu0 %v525
    %548 = vmatprep.subr.mxu0 0.0
    %549 = vmatpush1.msra.mxu0 %v526
    %550 = vmatprep.subr.mxu0 0.0
    %551 = vmatpush1.msra.mxu0 %v527
    %552 = vmatprep.subr.mxu0 0.0
    %553 = vmatpush1.msra.mxu0 %v528
    %554 = vmatprep.subr.mxu0 0.0
    %555 = vmatpush1.msra.mxu0 %v529
    %556 = vmatprep.subr.mxu0 0.0
    %557 = vmatpush1.msra.mxu0 %v530
    %558 = vmatprep.subr.mxu0 0.0
    %559 = vmatpush1.msra.mxu0 %v531
    %560 = vmatprep.subr.mxu0 0.0
    %561 = vmatpush1.msra.mxu0 %v532
    %562 = vmatprep.subr.mxu0 0.0
    %563 = vmatpush1.msra.mxu0 %v533
    %564 = vmatprep.subr.mxu0 0.0
    %565 = vmatpush1.msra.mxu0 %v534
    %566 = vmatprep.subr.mxu0 0.0
    %567 = vmatpush1.msra.mxu0 %v535
    %568 = vmatprep.subr.mxu0 0.0
    %569 = vmatpush1.msra.mxu0 0.0
    %570 = vmatprep.subr.mxu0 0.0
    %571 = vmatpush1.msra.mxu0 0.0
    %572 = vmatprep.subr.mxu0 0.0
    %573 = vmatpush1.msra.mxu0 0.0
    %574 = vmatprep.subr.mxu0 0.0
    %575 = vmatpush1.msra.mxu0 0.0
    %576 = vmatprep.subr.mxu0 0.0
    %577 = vmatpush1.msra.mxu0 0.0
    %578 = vmatprep.subr.mxu0 0.0
    %579 = vmatpush1.msra.mxu0 0.0
    %580 = vmatprep.subr.mxu0 0.0
    %581 = vmatpush1.msra.mxu0 0.0
    %582 = vmatprep.subr.mxu0 0.0
    %583 = vmatpush1.msra.mxu0 0.0
    %584 = vmatprep.subr.mxu0 0.0
    %585 = vmatpush1.msra.mxu0 0.0
    %586 = vmatprep.subr.mxu0 0.0
    %587 = vmatpush1.msra.mxu0 0.0
    %588 = vmatprep.subr.mxu0 0.0
    %589 = vmatpush1.msra.mxu0 0.0
    %590 = vmatprep.subr.mxu0 0.0
    %591 = vmatpush1.msra.mxu0 0.0
    %592 = vmatprep.subr.mxu0 0.0
    %593 = vmatpush1.msra.mxu0 0.0
    %594 = vmatprep.subr.mxu0 0.0
    %595 = vmatpush1.msra.mxu0 0.0
    %596 = vmatprep.subr.mxu0 0.0
    %597 = vmatpush1.msra.mxu0 0.0
    %598 = vmatprep.subr.mxu0 0.0
    %599 = vmatpush1.msra.mxu0 0.0
    %600 = vmatprep.mubr.f32.mxu0 0.0
    %601 = vmatmul.mubr.f32.gmra.mrb[0].mxu0 %v30
    %v602 = vpop.f32.mrb[0].mxu0
    %v603 = vadd.f32 0.0, %v602
    %v604 = vpop.f32.mrb[0].mxu0
    %605 = vdwg.mxu0
    %v606 = vadd.f32 %v517, %v603
    %v607 = vld [vmem:[%s1 + $0x200] sm:$0xff]
    %v608 = vld [vmem:[%s1 + $0x208] sm:$0xff]
    %v609 = vld [vmem:[%s1 + $0x210] sm:$0xff]
    %v610 = vld [vmem:[%s1 + $0x218] sm:$0xff]
    %v611 = vld [vmem:[%s1 + $0x220] sm:$0xff]
    %v612 = vld [vmem:[%s1 + $0x228] sm:$0xff]
    %v613 = vld [vmem:[%s1 + $0x230] sm:$0xff]
    %v614 = vld [vmem:[%s1 + $0x238] sm:$0xff]
    %v615 = vld [vmem:[%s1 + $0x240] sm:$0xff]
    %v616 = vld [vmem:[%s1 + $0x248] sm:$0xff]
    %v617 = vld [vmem:[%s1 + $0x250] sm:$0xff]
    %v618 = vld [vmem:[%s1 + $0x258] sm:$0xff]
    %v619 = vld [vmem:[%s1 + $0x260] sm:$0xff]
    %v620 = vld [vmem:[%s1 + $0x268] sm:$0xff]
    %v621 = vld [vmem:[%s1 + $0x270] sm:$0xff]
    %v622 = vld [vmem:[%s1 + $0x278] sm:$0xff]
    %623 = vmatprep.subr.mxu0 0.0
    %624 = vmatpush1.msra.mxu0 %v607
    %625 = vmatprep.subr.mxu0 0.0
    %626 = vmatpush1.msra.mxu0 %v608
    %627 = vmatprep.subr.mxu0 0.0
    %628 = vmatpush1.msra.mxu0 %v609
    %629 = vmatprep.subr.mxu0 0.0
    %630 = vmatpush1.msra.mxu0 %v610
    %631 = vmatprep.subr.mxu0 0.0
    %632 = vmatpush1.msra.mxu0 %v611
    %633 = vmatprep.subr.mxu0 0.0
    %634 = vmatpush1.msra.mxu0 %v612
    %635 = vmatprep.subr.mxu0 0.0
    %636 = vmatpush1.msra.mxu0 %v613
    %637 = vmatprep.subr.mxu0 0.0
    %638 = vmatpush1.msra.mxu0 %v614
    %639 = vmatprep.subr.mxu0 0.0
    %640 = vmatpush1.msra.mxu0 %v615
    %641 = vmatprep.subr.mxu0 0.0
    %642 = vmatpush1.msra.mxu0 %v616
    %643 = vmatprep.subr.mxu0 0.0
    %644 = vmatpush1.msra.mxu0 %v617
    %645 = vmatprep.subr.mxu0 0.0
    %646 = vmatpush1.msra.mxu0 %v618
    %647 = vmatprep.subr.mxu0 0.0
    %648 = vmatpush1.msra.mxu0 %v619
    %649 = vmatprep.subr.mxu0 0.0
    %650 = vmatpush1.msra.mxu0 %v620
    %651 = vmatprep.subr.mxu0 0.0
    %652 = vmatpush1.msra.mxu0 %v621
    %653 = vmatprep.subr.mxu0 0.0
    %654 = vmatpush1.msra.mxu0 %v622
    %655 = vmatprep.subr.mxu0 0.0
    %656 = vmatpush1.msra.mxu0 0.0
    %657 = vmatprep.subr.mxu0 0.0
    %658 = vmatpush1.msra.mxu0 0.0
    %659 = vmatprep.subr.mxu0 0.0
    %660 = vmatpush1.msra.mxu0 0.0
    %661 = vmatprep.subr.mxu0 0.0
    %662 = vmatpush1.msra.mxu0 0.0
    %663 = vmatprep.subr.mxu0 0.0
    %664 = vmatpush1.msra.mxu0 0.0
    %665 = vmatprep.subr.mxu0 0.0
    %666 = vmatpush1.msra.mxu0 0.0
    %667 = vmatprep.subr.mxu0 0.0
    %668 = vmatpush1.msra.mxu0 0.0
    %669 = vmatprep.subr.mxu0 0.0
    %670 = vmatpush1.msra.mxu0 0.0
    %671 = vmatprep.subr.mxu0 0.0
    %672 = vmatpush1.msra.mxu0 0.0
    %673 = vmatprep.subr.mxu0 0.0
    %674 = vmatpush1.msra.mxu0 0.0
    %675 = vmatprep.subr.mxu0 0.0
    %676 = vmatpush1.msra.mxu0 0.0
    %677 = vmatprep.subr.mxu0 0.0
    %678 = vmatpush1.msra.mxu0 0.0
    %679 = vmatprep.subr.mxu0 0.0
    %680 = vmatpush1.msra.mxu0 0.0
    %681 = vmatprep.subr.mxu0 0.0
    %682 = vmatpush1.msra.mxu0 0.0
    %683 = vmatprep.subr.mxu0 0.0
    %684 = vmatpush1.msra.mxu0 0.0
    %685 = vmatprep.subr.mxu0 0.0
    %686 = vmatpush1.msra.mxu0 0.0
    %687 = vmatprep.mubr.f32.mxu0 0.0
    %688 = vmatmul.mubr.f32.gmra.mrb[0].mxu0 %v32
    %v689 = vpop.f32.mrb[0].mxu0
    %v690 = vadd.f32 0.0, %v689
    %v691 = vpop.f32.mrb[0].mxu0
    %692 = vdwg.mxu0
    %v693 = vadd.f32 %v606, %v690
    %v694 = vlaneseq
    %v695 = vshrl.u32 %v694, 7
    %v696 = vsub.s32 0, %v695
    %v697 = vrot.slane %v347, %v696
    %v698 = vadd.f32 %v693, %v697
    %v699 = vld [vmem:[%s1 + $0x280] sm:$0xff]
    %v700 = vld [vmem:[%s1 + $0x288] sm:$0xff]
    %v701 = vld [vmem:[%s1 + $0x290] sm:$0xff]
    %v702 = vld [vmem:[%s1 + $0x298] sm:$0xff]
    %v703 = vld [vmem:[#allocation2 + $0x2] sm:$0x1]
    %v704 = vlaneseq
    %v705 = vshrl.u32 %v704, 7
    %v706 = vsub.s32 0, %v705
    %v707 = vrot.slane %v703, %v706
    %vm708 = vcmask 261120
    %v710 = vsel %vm708, %v698, 0
    %712 = vmatprep.subr.mxu0 0.0
    %713 = vmatpush1.msra.mxu0 %v699
    %714 = vmatprep.subr.mxu0 0.0
    %715 = vmatpush1.msra.mxu0 %v700
    %716 = vmatprep.subr.mxu0 0.0
    %717 = vmatpush1.msra.mxu0 %v701
    %718 = vmatprep.subr.mxu0 0.0
    %719 = vmatpush1.msra.mxu0 %v702
    %720 = vmatprep.subr.mxu0 0.0
    %721 = vmatpush1.msra.mxu0 0.0
    %722 = vmatprep.subr.mxu0 0.0
    %723 = vmatpush1.msra.mxu0 0.0
    %724 = vmatprep.subr.mxu0 0.0
    %725 = vmatpush1.msra.mxu0 0.0
    %726 = vmatprep.subr.mxu0 0.0
    %727 = vmatpush1.msra.mxu0 0.0
    %728 = vmatprep.subr.mxu0 0.0
    %729 = vmatpush1.msra.mxu0 0.0
    %730 = vmatprep.subr.mxu0 0.0
    %731 = vmatpush1.msra.mxu0 0.0
    %732 = vmatprep.subr.mxu0 0.0
    %733 = vmatpush1.msra.mxu0 0.0
    %734 = vmatprep.subr.mxu0 0.0
    %735 = vmatpush1.msra.mxu0 0.0
    %736 = vmatprep.subr.mxu0 0.0
    %737 = vmatpush1.msra.mxu0 0.0
    %738 = vmatprep.subr.mxu0 0.0
    %739 = vmatpush1.msra.mxu0 0.0
    %740 = vmatprep.subr.mxu0 0.0
    %741 = vmatpush1.msra.mxu0 0.0
    %742 = vmatprep.subr.mxu0 0.0
    %743 = vmatpush1.msra.mxu0 0.0
    %744 = vmatprep.subr.mxu0 0.0
    %745 = vmatpush1.msra.mxu0 0.0
    %746 = vmatprep.subr.mxu0 0.0
    %747 = vmatpush1.msra.mxu0 0.0
    %748 = vmatprep.subr.mxu0 0.0
    %749 = vmatpush1.msra.mxu0 0.0
    %750 = vmatprep.subr.mxu0 0.0
    %751 = vmatpush1.msra.mxu0 0.0
    %752 = vmatprep.subr.mxu0 0.0
    %753 = vmatpush1.msra.mxu0 0.0
    %754 = vmatprep.subr.mxu0 0.0
    %755 = vmatpush1.msra.mxu0 0.0
    %756 = vmatprep.subr.mxu0 0.0
    %757 = vmatpush1.msra.mxu0 0.0
    %758 = vmatprep.subr.mxu0 0.0
    %759 = vmatpush1.msra.mxu0 0.0
    %760 = vmatprep.subr.mxu0 0.0
    %761 = vmatpush1.msra.mxu0 0.0
    %762 = vmatprep.subr.mxu0 0.0
    %763 = vmatpush1.msra.mxu0 0.0
    %764 = vmatprep.subr.mxu0 0.0
    %765 = vmatpush1.msra.mxu0 0.0
    %766 = vmatprep.subr.mxu0 0.0
    %767 = vmatpush1.msra.mxu0 0.0
    %768 = vmatprep.subr.mxu0 0.0
    %769 = vmatpush1.msra.mxu0 0.0
    %770 = vmatprep.subr.mxu0 0.0
    %771 = vmatpush1.msra.mxu0 0.0
    %772 = vmatprep.subr.mxu0 0.0
    %773 = vmatpush1.msra.mxu0 0.0
    %774 = vmatprep.subr.mxu0 0.0
    %775 = vmatpush1.msra.mxu0 0.0
    %776 = vmatprep.mubr.f32.mxu0 0.0
    %777 = vmatmul.mubr.f32.gmra.mrb[0].mxu0 %v710
    %v778 = vpop.f32.mrb[0].mxu0
    %v779 = vadd.f32 %v707, %v778
    %v780 = vpop.f32.mrb[0].mxu0
    %781 = vdwg.mxu0
    %782 = vst [vmem:[%s3 + $0x8] sm:$0x3] %v779
    %783 = vrot.lane.b32.xlu0 %v698, 96
    %v784 = vpop.permute.xlu0 %783
    %v785 = vsel %vm708, %v784, 0
    %787 = vmatprep.subr.mxu0 0.0
    %788 = vmatpush1.msra.mxu0 %v699
    %789 = vmatprep.subr.mxu0 0.0
    %790 = vmatpush1.msra.mxu0 %v700
    %791 = vmatprep.subr.mxu0 0.0
    %792 = vmatpush1.msra.mxu0 %v701
    %793 = vmatprep.subr.mxu0 0.0
    %794 = vmatpush1.msra.mxu0 %v702
    %795 = vmatprep.subr.mxu0 0.0
    %796 = vmatpush1.msra.mxu0 0.0
    %797 = vmatprep.subr.mxu0 0.0
    %798 = vmatpush1.msra.mxu0 0.0
    %799 = vmatprep.subr.mxu0 0.0
    %800 = vmatpush1.msra.mxu0 0.0
    %801 = vmatprep.subr.mxu0 0.0
    %802 = vmatpush1.msra.mxu0 0.0
    %803 = vmatprep.subr.mxu0 0.0
    %804 = vmatpush1.msra.mxu0 0.0
    %805 = vmatprep.subr.mxu0 0.0
    %806 = vmatpush1.msra.mxu0 0.0
    %807 = vmatprep.subr.mxu0 0.0
    %808 = vmatpush1.msra.mxu0 0.0
    %809 = vmatprep.subr.mxu0 0.0
    %810 = vmatpush1.msra.mxu0 0.0
    %811 = vmatprep.subr.mxu0 0.0
    %812 = vmatpush1.msra.mxu0 0.0
    %813 = vmatprep.subr.mxu0 0.0
    %814 = vmatpush1.msra.mxu0 0.0
    %815 = vmatprep.subr.mxu0 0.0
    %816 = vmatpush1.msra.mxu0 0.0
    %817 = vmatprep.subr.mxu0 0.0
    %818 = vmatpush1.msra.mxu0 0.0
    %819 = vmatprep.subr.mxu0 0.0
    %820 = vmatpush1.msra.mxu0 0.0
    %821 = vmatprep.subr.mxu0 0.0
    %822 = vmatpush1.msra.mxu0 0.0
    %823 = vmatprep.subr.mxu0 0.0
    %824 = vmatpush1.msra.mxu0 0.0
    %825 = vmatprep.subr.mxu0 0.0
    %826 = vmatpush1.msra.mxu0 0.0
    %827 = vmatprep.subr.mxu0 0.0
    %828 = vmatpush1.msra.mxu0 0.0
    %829 = vmatprep.subr.mxu0 0.0
    %830 = vmatpush1.msra.mxu0 0.0
    %831 = vmatprep.subr.mxu0 0.0
    %832 = vmatpush1.msra.mxu0 0.0
    %833 = vmatprep.subr.mxu0 0.0
    %834 = vmatpush1.msra.mxu0 0.0
    %835 = vmatprep.subr.mxu0 0.0
    %836 = vmatpush1.msra.mxu0 0.0
    %837 = vmatprep.subr.mxu0 0.0
    %838 = vmatpush1.msra.mxu0 0.0
    %839 = vmatprep.subr.mxu0 0.0
    %840 = vmatpush1.msra.mxu0 0.0
    %841 = vmatprep.subr.mxu0 0.0
    %842 = vmatpush1.msra.mxu0 0.0
    %843 = vmatprep.subr.mxu0 0.0
    %844 = vmatpush1.msra.mxu0 0.0
    %845 = vmatprep.subr.mxu0 0.0
    %846 = vmatpush1.msra.mxu0 0.0
    %847 = vmatprep.subr.mxu0 0.0
    %848 = vmatpush1.msra.mxu0 0.0
    %849 = vmatprep.subr.mxu0 0.0
    %850 = vmatpush1.msra.mxu0 0.0
    %851 = vmatprep.mubr.f32.mxu0 0.0
    %852 = vmatmul.mubr.f32.gmra.mrb[0].mxu0 %v785
    %v853 = vpop.f32.mrb[0].mxu0
    %v854 = vadd.f32 %v707, %v853
    %v855 = vpop.f32.mrb[0].mxu0
    %856 = vdwg.mxu0
    %v858 = vrot.slane %v854, 6
    %860 = vst [vmem:[%s3 + $0x8] sm:$0xc] %v858
    %861 = vrot.lane.b32.xlu0 %v698, 64
    %v862 = vpop.permute.xlu0 %861
    %v863 = vsel %vm708, %v862, 0
    %865 = vmatprep.subr.mxu0 0.0
    %866 = vmatpush1.msra.mxu0 %v699
    %867 = vmatprep.subr.mxu0 0.0
    %868 = vmatpush1.msra.mxu0 %v700
    %869 = vmatprep.subr.mxu0 0.0
    %870 = vmatpush1.msra.mxu0 %v701
    %871 = vmatprep.subr.mxu0 0.0
    %872 = vmatpush1.msra.mxu0 %v702
    %873 = vmatprep.subr.mxu0 0.0
    %874 = vmatpush1.msra.mxu0 0.0
    %875 = vmatprep.subr.mxu0 0.0
    %876 = vmatpush1.msra.mxu0 0.0
    %877 = vmatprep.subr.mxu0 0.0
    %878 = vmatpush1.msra.mxu0 0.0
    %879 = vmatprep.subr.mxu0 0.0
    %880 = vmatpush1.msra.mxu0 0.0
    %881 = vmatprep.subr.mxu0 0.0
    %882 = vmatpush1.msra.mxu0 0.0
    %883 = vmatprep.subr.mxu0 0.0
    %884 = vmatpush1.msra.mxu0 0.0
    %885 = vmatprep.subr.mxu0 0.0
    %886 = vmatpush1.msra.mxu0 0.0
    %887 = vmatprep.subr.mxu0 0.0
    %888 = vmatpush1.msra.mxu0 0.0
    %889 = vmatprep.subr.mxu0 0.0
    %890 = vmatpush1.msra.mxu0 0.0
    %891 = vmatprep.subr.mxu0 0.0
    %892 = vmatpush1.msra.mxu0 0.0
    %893 = vmatprep.subr.mxu0 0.0
    %894 = vmatpush1.msra.mxu0 0.0
    %895 = vmatprep.subr.mxu0 0.0
    %896 = vmatpush1.msra.mxu0 0.0
    %897 = vmatprep.subr.mxu0 0.0
    %898 = vmatpush1.msra.mxu0 0.0
    %899 = vmatprep.subr.mxu0 0.0
    %900 = vmatpush1.msra.mxu0 0.0
    %901 = vmatprep.subr.mxu0 0.0
    %902 = vmatpush1.msra.mxu0 0.0
    %903 = vmatprep.subr.mxu0 0.0
    %904 = vmatpush1.msra.mxu0 0.0
    %905 = vmatprep.subr.mxu0 0.0
    %906 = vmatpush1.msra.mxu0 0.0
    %907 = vmatprep.subr.mxu0 0.0
    %908 = vmatpush1.msra.mxu0 0.0
    %909 = vmatprep.subr.mxu0 0.0
    %910 = vmatpush1.msra.mxu0 0.0
    %911 = vmatprep.subr.mxu0 0.0
    %912 = vmatpush1.msra.mxu0 0.0
    %913 = vmatprep.subr.mxu0 0.0
    %914 = vmatpush1.msra.mxu0 0.0
    %915 = vmatprep.subr.mxu0 0.0
    %916 = vmatpush1.msra.mxu0 0.0
    %917 = vmatprep.subr.mxu0 0.0
    %918 = vmatpush1.msra.mxu0 0.0
    %919 = vmatprep.subr.mxu0 0.0
    %920 = vmatpush1.msra.mxu0 0.0
    %921 = vmatprep.subr.mxu0 0.0
    %922 = vmatpush1.msra.mxu0 0.0
    %923 = vmatprep.subr.mxu0 0.0
    %924 = vmatpush1.msra.mxu0 0.0
    %925 = vmatprep.subr.mxu0 0.0
    %926 = vmatpush1.msra.mxu0 0.0
    %927 = vmatprep.subr.mxu0 0.0
    %928 = vmatpush1.msra.mxu0 0.0
    %929 = vmatprep.mubr.f32.mxu0 0.0
    %930 = vmatmul.mubr.f32.gmra.mrb[0].mxu0 %v863
    %v931 = vpop.f32.mrb[0].mxu0
    %v932 = vadd.f32 %v707, %v931
    %v933 = vpop.f32.mrb[0].mxu0
    %934 = vdwg.mxu0
    %v936 = vrot.slane %v932, 4
    %938 = vst [vmem:[%s3 + $0x8] sm:$0x30] %v936
    %939 = vrot.lane.b32.xlu0 %v698, 32
    %v940 = vpop.permute.xlu0 %939
    %v941 = vsel %vm708, %v940, 0
    %943 = vmatprep.subr.mxu0 0.0
    %944 = vmatpush1.msra.mxu0 %v699
    %945 = vmatprep.subr.mxu0 0.0
    %946 = vmatpush1.msra.mxu0 %v700
    %947 = vmatprep.subr.mxu0 0.0
    %948 = vmatpush1.msra.mxu0 %v701
    %949 = vmatprep.subr.mxu0 0.0
    %950 = vmatpush1.msra.mxu0 %v702
    %951 = vmatprep.subr.mxu0 0.0
    %952 = vmatpush1.msra.mxu0 0.0
    %953 = vmatprep.subr.mxu0 0.0
    %954 = vmatpush1.msra.mxu0 0.0
    %955 = vmatprep.subr.mxu0 0.0
    %956 = vmatpush1.msra.mxu0 0.0
    %957 = vmatprep.subr.mxu0 0.0
    %958 = vmatpush1.msra.mxu0 0.0
    %959 = vmatprep.subr.mxu0 0.0
    %960 = vmatpush1.msra.mxu0 0.0
    %961 = vmatprep.subr.mxu0 0.0
    %962 = vmatpush1.msra.mxu0 0.0
    %963 = vmatprep.subr.mxu0 0.0
    %964 = vmatpush1.msra.mxu0 0.0
    %965 = vmatprep.subr.mxu0 0.0
    %966 = vmatpush1.msra.mxu0 0.0
    %967 = vmatprep.subr.mxu0 0.0
    %968 = vmatpush1.msra.mxu0 0.0
    %969 = vmatprep.subr.mxu0 0.0
    %970 = vmatpush1.msra.mxu0 0.0
    %971 = vmatprep.subr.mxu0 0.0
    %972 = vmatpush1.msra.mxu0 0.0
    %973 = vmatprep.subr.mxu0 0.0
    %974 = vmatpush1.msra.mxu0 0.0
    %975 = vmatprep.subr.mxu0 0.0
    %976 = vmatpush1.msra.mxu0 0.0
    %977 = vmatprep.subr.mxu0 0.0
    %978 = vmatpush1.msra.mxu0 0.0
    %979 = vmatprep.subr.mxu0 0.0
    %980 = vmatpush1.msra.mxu0 0.0
    %981 = vmatprep.subr.mxu0 0.0
    %982 = vmatpush1.msra.mxu0 0.0
    %983 = vmatprep.subr.mxu0 0.0
    %984 = vmatpush1.msra.mxu0 0.0
    %985 = vmatprep.subr.mxu0 0.0
    %986 = vmatpush1.msra.mxu0 0.0
    %987 = vmatprep.subr.mxu0 0.0
    %988 = vmatpush1.msra.mxu0 0.0
    %989 = vmatprep.subr.mxu0 0.0
    %990 = vmatpush1.msra.mxu0 0.0
    %991 = vmatprep.subr.mxu0 0.0
    %992 = vmatpush1.msra.mxu0 0.0
    %993 = vmatprep.subr.mxu0 0.0
    %994 = vmatpush1.msra.mxu0 0.0
    %995 = vmatprep.subr.mxu0 0.0
    %996 = vmatpush1.msra.mxu0 0.0
    %997 = vmatprep.subr.mxu0 0.0
    %998 = vmatpush1.msra.mxu0 0.0
    %999 = vmatprep.subr.mxu0 0.0
    %1000 = vmatpush1.msra.mxu0 0.0
    %1001 = vmatprep.subr.mxu0 0.0
    %1002 = vmatpush1.msra.mxu0 0.0
    %1003 = vmatprep.subr.mxu0 0.0
    %1004 = vmatpush1.msra.mxu0 0.0
    %1005 = vmatprep.subr.mxu0 0.0
    %1006 = vmatpush1.msra.mxu0 0.0
    %1007 = vmatprep.mubr.f32.mxu0 0.0
    %1008 = vmatmul.mubr.f32.gmra.mrb[0].mxu0 %v941
    %v1009 = vpop.f32.mrb[0].mxu0
    %v1010 = vadd.f32 %v707, %v1009
    %v1011 = vpop.f32.mrb[0].mxu0
    %1012 = vdwg.mxu0
    %v1014 = vrot.slane %v1010, 2
    %1016 = vst [vmem:[%s3 + $0x8] sm:$0xc0] %v1014
    %v1017 = vld [vmem:[#allocation2 + $0x3] sm:$0x1]
    %v1018 = vld [vmem:[%s1 + $0x300] sm:$0xff]
    %v1019 = vld [vmem:[%s1 + $0x308] sm:$0xff]
    %v1020 = vld [vmem:[%s1 + $0x310] sm:$0xff]
    %v1021 = vld [vmem:[%s1 + $0x318] sm:$0xff]
    %v1022 = vld [vmem:[%s1 + $0x380] sm:$0xff]
    %v1023 = vld [vmem:[%s1 + $0x388] sm:$0xff]
    %v1024 = vld [vmem:[%s1 + $0x390] sm:$0xff]
    %v1025 = vld [vmem:[%s1 + $0x398] sm:$0xff]
    %1026 = vmatprep.subr.mxu0 0.0
    %1027 = vmatpush1.msra.mxu0 %v1022
    %1028 = vmatprep.subr.mxu0 0.0
    %1029 = vmatpush1.msra.mxu0 %v1023
    %1030 = vmatprep.subr.mxu0 0.0
    %1031 = vmatpush1.msra.mxu0 %v1024
    %1032 = vmatprep.subr.mxu0 0.0
    %1033 = vmatpush1.msra.mxu0 %v1025
    %1034 = vmatprep.subr.mxu0 0.0
    %1035 = vmatpush1.msra.mxu0 0.0
    %1036 = vmatprep.subr.mxu0 0.0
    %1037 = vmatpush1.msra.mxu0 0.0
    %1038 = vmatprep.subr.mxu0 0.0
    %1039 = vmatpush1.msra.mxu0 0.0
    %1040 = vmatprep.subr.mxu0 0.0
    %1041 = vmatpush1.msra.mxu0 0.0
    %1042 = vmatprep.subr.mxu0 0.0
    %1043 = vmatpush1.msra.mxu0 0.0
    %1044 = vmatprep.subr.mxu0 0.0
    %1045 = vmatpush1.msra.mxu0 0.0
    %1046 = vmatprep.subr.mxu0 0.0
    %1047 = vmatpush1.msra.mxu0 0.0
    %1048 = vmatprep.subr.mxu0 0.0
    %1049 = vmatpush1.msra.mxu0 0.0
    %1050 = vmatprep.subr.mxu0 0.0
    %1051 = vmatpush1.msra.mxu0 0.0
    %1052 = vmatprep.subr.mxu0 0.0
    %1053 = vmatpush1.msra.mxu0 0.0
    %1054 = vmatprep.subr.mxu0 0.0
    %1055 = vmatpush1.msra.mxu0 0.0
    %1056 = vmatprep.subr.mxu0 0.0
    %1057 = vmatpush1.msra.mxu0 0.0
    %1058 = vmatprep.subr.mxu0 0.0
    %1059 = vmatpush1.msra.mxu0 0.0
    %1060 = vmatprep.subr.mxu0 0.0
    %1061 = vmatpush1.msra.mxu0 0.0
    %1062 = vmatprep.subr.mxu0 0.0
    %1063 = vmatpush1.msra.mxu0 0.0
    %1064 = vmatprep.subr.mxu0 0.0
    %1065 = vmatpush1.msra.mxu0 0.0
    %1066 = vmatprep.subr.mxu0 0.0
    %1067 = vmatpush1.msra.mxu0 0.0
    %1068 = vmatprep.subr.mxu0 0.0
    %1069 = vmatpush1.msra.mxu0 0.0
    %1070 = vmatprep.subr.mxu0 0.0
    %1071 = vmatpush1.msra.mxu0 0.0
    %1072 = vmatprep.subr.mxu0 0.0
    %1073 = vmatpush1.msra.mxu0 0.0
    %1074 = vmatprep.subr.mxu0 0.0
    %1075 = vmatpush1.msra.mxu0 0.0
    %1076 = vmatprep.subr.mxu0 0.0
    %1077 = vmatpush1.msra.mxu0 0.0
    %1078 = vmatprep.subr.mxu0 0.0
    %1079 = vmatpush1.msra.mxu0 0.0
    %1080 = vmatprep.subr.mxu0 0.0
    %1081 = vmatpush1.msra.mxu0 0.0
    %1082 = vmatprep.subr.mxu0 0.0
    %1083 = vmatpush1.msra.mxu0 0.0
    %1084 = vmatprep.subr.mxu0 0.0
    %1085 = vmatpush1.msra.mxu0 0.0
    %1086 = vmatprep.subr.mxu0 0.0
    %1087 = vmatpush1.msra.mxu0 0.0
    %1088 = vmatprep.subr.mxu0 0.0
    %1089 = vmatpush1.msra.mxu0 0.0
    %1090 = vmatprep.mubr.f32.mxu0 0.0
    %1091 = vmatmul.mubr.f32.gmra.mrb[0].mxu0 %v785
    %v1092 = vpop.f32.mrb[0].mxu0
    %v1093 = vadd.f32 0.0, %v1092
    %v1094 = vpop.f32.mrb[0].mxu0
    %1095 = vdwg.mxu0
    %1096 = vmatprep.subr.mxu0 0.0
    %1097 = vmatpush1.msra.mxu0 %v1018
    %1098 = vmatprep.subr.mxu0 0.0
    %1099 = vmatpush1.msra.mxu0 %v1019
    %1100 = vmatprep.subr.mxu0 0.0
    %1101 = vmatpush1.msra.mxu0 %v1020
    %1102 = vmatprep.subr.mxu0 0.0
    %1103 = vmatpush1.msra.mxu0 %v1021
    %1104 = vmatprep.subr.mxu0 0.0
    %1105 = vmatpush1.msra.mxu0 0.0
    %1106 = vmatprep.subr.mxu0 0.0
    %1107 = vmatpush1.msra.mxu0 0.0
    %1108 = vmatprep.subr.mxu0 0.0
    %1109 = vmatpush1.msra.mxu0 0.0
    %1110 = vmatprep.subr.mxu0 0.0
    %1111 = vmatpush1.msra.mxu0 0.0
    %1112 = vmatprep.subr.mxu0 0.0
    %1113 = vmatpush1.msra.mxu0 0.0
    %1114 = vmatprep.subr.mxu0 0.0
    %1115 = vmatpush1.msra.mxu0 0.0
    %1116 = vmatprep.subr.mxu0 0.0
    %1117 = vmatpush1.msra.mxu0 0.0
    %1118 = vmatprep.subr.mxu0 0.0
    %1119 = vmatpush1.msra.mxu0 0.0
    %1120 = vmatprep.subr.mxu0 0.0
    %1121 = vmatpush1.msra.mxu0 0.0
    %1122 = vmatprep.subr.mxu0 0.0
    %1123 = vmatpush1.msra.mxu0 0.0
    %1124 = vmatprep.subr.mxu0 0.0
    %1125 = vmatpush1.msra.mxu0 0.0
    %1126 = vmatprep.subr.mxu0 0.0
    %1127 = vmatpush1.msra.mxu0 0.0
    %1128 = vmatprep.subr.mxu0 0.0
    %1129 = vmatpush1.msra.mxu0 0.0
    %1130 = vmatprep.subr.mxu0 0.0
    %1131 = vmatpush1.msra.mxu0 0.0
    %1132 = vmatprep.subr.mxu0 0.0
    %1133 = vmatpush1.msra.mxu0 0.0
    %1134 = vmatprep.subr.mxu0 0.0
    %1135 = vmatpush1.msra.mxu0 0.0
    %1136 = vmatprep.subr.mxu0 0.0
    %1137 = vmatpush1.msra.mxu0 0.0
    %1138 = vmatprep.subr.mxu0 0.0
    %1139 = vmatpush1.msra.mxu0 0.0
    %1140 = vmatprep.subr.mxu0 0.0
    %1141 = vmatpush1.msra.mxu0 0.0
    %1142 = vmatprep.subr.mxu0 0.0
    %1143 = vmatpush1.msra.mxu0 0.0
    %1144 = vmatprep.subr.mxu0 0.0
    %1145 = vmatpush1.msra.mxu0 0.0
    %1146 = vmatprep.subr.mxu0 0.0
    %1147 = vmatpush1.msra.mxu0 0.0
    %1148 = vmatprep.subr.mxu0 0.0
    %1149 = vmatpush1.msra.mxu0 0.0
    %1150 = vmatprep.subr.mxu0 0.0
    %1151 = vmatpush1.msra.mxu0 0.0
    %1152 = vmatprep.subr.mxu0 0.0
    %1153 = vmatpush1.msra.mxu0 0.0
    %1154 = vmatprep.subr.mxu0 0.0
    %1155 = vmatpush1.msra.mxu0 0.0
    %1156 = vmatprep.subr.mxu0 0.0
    %1157 = vmatpush1.msra.mxu0 0.0
    %1158 = vmatprep.subr.mxu0 0.0
    %1159 = vmatpush1.msra.mxu0 0.0
    %1160 = vmatprep.mubr.f32.mxu0 0.0
    %1161 = vmatmul.mubr.f32.gmra.mrb[0].mxu0 %v710
    %v1162 = vpop.f32.mrb[0].mxu0
    %v1163 = vadd.f32 %v1093, %v1162
    %v1164 = vpop.f32.mrb[0].mxu0
    %1165 = vdwg.mxu0
    %v1166 = vld [vmem:[%s1 + $0x400] sm:$0xff]
    %v1167 = vld [vmem:[%s1 + $0x408] sm:$0xff]
    %v1168 = vld [vmem:[%s1 + $0x410] sm:$0xff]
    %v1169 = vld [vmem:[%s1 + $0x418] sm:$0xff]
    %1170 = vmatprep.subr.mxu0 0.0
    %1171 = vmatpush1.msra.mxu0 %v1166
    %1172 = vmatprep.subr.mxu0 0.0
    %1173 = vmatpush1.msra.mxu0 %v1167
    %1174 = vmatprep.subr.mxu0 0.0
    %1175 = vmatpush1.msra.mxu0 %v1168
    %1176 = vmatprep.subr.mxu0 0.0
    %1177 = vmatpush1.msra.mxu0 %v1169
    %1178 = vmatprep.subr.mxu0 0.0
    %1179 = vmatpush1.msra.mxu0 0.0
    %1180 = vmatprep.subr.mxu0 0.0
    %1181 = vmatpush1.msra.mxu0 0.0
    %1182 = vmatprep.subr.mxu0 0.0
    %1183 = vmatpush1.msra.mxu0 0.0
    %1184 = vmatprep.subr.mxu0 0.0
    %1185 = vmatpush1.msra.mxu0 0.0
    %1186 = vmatprep.subr.mxu0 0.0
    %1187 = vmatpush1.msra.mxu0 0.0
    %1188 = vmatprep.subr.mxu0 0.0
    %1189 = vmatpush1.msra.mxu0 0.0
    %1190 = vmatprep.subr.mxu0 0.0
    %1191 = vmatpush1.msra.mxu0 0.0
    %1192 = vmatprep.subr.mxu0 0.0
    %1193 = vmatpush1.msra.mxu0 0.0
    %1194 = vmatprep.subr.mxu0 0.0
    %1195 = vmatpush1.msra.mxu0 0.0
    %1196 = vmatprep.subr.mxu0 0.0
    %1197 = vmatpush1.msra.mxu0 0.0
    %1198 = vmatprep.subr.mxu0 0.0
    %1199 = vmatpush1.msra.mxu0 0.0
    %1200 = vmatprep.subr.mxu0 0.0
    %1201 = vmatpush1.msra.mxu0 0.0
    %1202 = vmatprep.subr.mxu0 0.0
    %1203 = vmatpush1.msra.mxu0 0.0
    %1204 = vmatprep.subr.mxu0 0.0
    %1205 = vmatpush1.msra.mxu0 0.0
    %1206 = vmatprep.subr.mxu0 0.0
    %1207 = vmatpush1.msra.mxu0 0.0
    %1208 = vmatprep.subr.mxu0 0.0
    %1209 = vmatpush1.msra.mxu0 0.0
    %1210 = vmatprep.subr.mxu0 0.0
    %1211 = vmatpush1.msra.mxu0 0.0
    %1212 = vmatprep.subr.mxu0 0.0
    %1213 = vmatpush1.msra.mxu0 0.0
    %1214 = vmatprep.subr.mxu0 0.0
    %1215 = vmatpush1.msra.mxu0 0.0
    %1216 = vmatprep.subr.mxu0 0.0
    %1217 = vmatpush1.msra.mxu0 0.0
    %1218 = vmatprep.subr.mxu0 0.0
    %1219 = vmatpush1.msra.mxu0 0.0
    %1220 = vmatprep.subr.mxu0 0.0
    %1221 = vmatpush1.msra.mxu0 0.0
    %1222 = vmatprep.subr.mxu0 0.0
    %1223 = vmatpush1.msra.mxu0 0.0
    %1224 = vmatprep.subr.mxu0 0.0
    %1225 = vmatpush1.msra.mxu0 0.0
    %1226 = vmatprep.subr.mxu0 0.0
    %1227 = vmatpush1.msra.mxu0 0.0
    %1228 = vmatprep.subr.mxu0 0.0
    %1229 = vmatpush1.msra.mxu0 0.0
    %1230 = vmatprep.subr.mxu0 0.0
    %1231 = vmatpush1.msra.mxu0 0.0
    %1232 = vmatprep.subr.mxu0 0.0
    %1233 = vmatpush1.msra.mxu0 0.0
    %1234 = vmatprep.mubr.f32.mxu0 0.0
    %1235 = vmatmul.mubr.f32.gmra.mrb[0].mxu0 %v863
    %v1236 = vpop.f32.mrb[0].mxu0
    %v1237 = vadd.f32 0.0, %v1236
    %v1238 = vpop.f32.mrb[0].mxu0
    %1239 = vdwg.mxu0
    %v1240 = vadd.f32 %v1163, %v1237
    %v1241 = vld [vmem:[%s1 + $0x480] sm:$0xff]
    %v1242 = vld [vmem:[%s1 + $0x488] sm:$0xff]
    %v1243 = vld [vmem:[%s1 + $0x490] sm:$0xff]
    %v1244 = vld [vmem:[%s1 + $0x498] sm:$0xff]
    %1245 = vmatprep.subr.mxu0 0.0
    %1246 = vmatpush1.msra.mxu0 %v1241
    %1247 = vmatprep.subr.mxu0 0.0
    %1248 = vmatpush1.msra.mxu0 %v1242
    %1249 = vmatprep.subr.mxu0 0.0
    %1250 = vmatpush1.msra.mxu0 %v1243
    %1251 = vmatprep.subr.mxu0 0.0
    %1252 = vmatpush1.msra.mxu0 %v1244
    %1253 = vmatprep.subr.mxu0 0.0
    %1254 = vmatpush1.msra.mxu0 0.0
    %1255 = vmatprep.subr.mxu0 0.0
    %1256 = vmatpush1.msra.mxu0 0.0
    %1257 = vmatprep.subr.mxu0 0.0
    %1258 = vmatpush1.msra.mxu0 0.0
    %1259 = vmatprep.subr.mxu0 0.0
    %1260 = vmatpush1.msra.mxu0 0.0
    %1261 = vmatprep.subr.mxu0 0.0
    %1262 = vmatpush1.msra.mxu0 0.0
    %1263 = vmatprep.subr.mxu0 0.0
    %1264 = vmatpush1.msra.mxu0 0.0
    %1265 = vmatprep.subr.mxu0 0.0
    %1266 = vmatpush1.msra.mxu0 0.0
    %1267 = vmatprep.subr.mxu0 0.0
    %1268 = vmatpush1.msra.mxu0 0.0
    %1269 = vmatprep.subr.mxu0 0.0
    %1270 = vmatpush1.msra.mxu0 0.0
    %1271 = vmatprep.subr.mxu0 0.0
    %1272 = vmatpush1.msra.mxu0 0.0
    %1273 = vmatprep.subr.mxu0 0.0
    %1274 = vmatpush1.msra.mxu0 0.0
    %1275 = vmatprep.subr.mxu0 0.0
    %1276 = vmatpush1.msra.mxu0 0.0
    %1277 = vmatprep.subr.mxu0 0.0
    %1278 = vmatpush1.msra.mxu0 0.0
    %1279 = vmatprep.subr.mxu0 0.0
    %1280 = vmatpush1.msra.mxu0 0.0
    %1281 = vmatprep.subr.mxu0 0.0
    %1282 = vmatpush1.msra.mxu0 0.0
    %1283 = vmatprep.subr.mxu0 0.0
    %1284 = vmatpush1.msra.mxu0 0.0
    %1285 = vmatprep.subr.mxu0 0.0
    %1286 = vmatpush1.msra.mxu0 0.0
    %1287 = vmatprep.subr.mxu0 0.0
    %1288 = vmatpush1.msra.mxu0 0.0
    %1289 = vmatprep.subr.mxu0 0.0
    %1290 = vmatpush1.msra.mxu0 0.0
    %1291 = vmatprep.subr.mxu0 0.0
    %1292 = vmatpush1.msra.mxu0 0.0
    %1293 = vmatprep.subr.mxu0 0.0
    %1294 = vmatpush1.msra.mxu0 0.0
    %1295 = vmatprep.subr.mxu0 0.0
    %1296 = vmatpush1.msra.mxu0 0.0
    %1297 = vmatprep.subr.mxu0 0.0
    %1298 = vmatpush1.msra.mxu0 0.0
    %1299 = vmatprep.subr.mxu0 0.0
    %1300 = vmatpush1.msra.mxu0 0.0
    %1301 = vmatprep.subr.mxu0 0.0
    %1302 = vmatpush1.msra.mxu0 0.0
    %1303 = vmatprep.subr.mxu0 0.0
    %1304 = vmatpush1.msra.mxu0 0.0
    %1305 = vmatprep.subr.mxu0 0.0
    %1306 = vmatpush1.msra.mxu0 0.0
    %1307 = vmatprep.subr.mxu0 0.0
    %1308 = vmatpush1.msra.mxu0 0.0
    %1309 = vmatprep.mubr.f32.mxu0 0.0
    %1310 = vmatmul.mubr.f32.gmra.mrb[0].mxu0 %v941
    %v1311 = vpop.f32.mrb[0].mxu0
    %v1312 = vadd.f32 0.0, %v1311
    %v1313 = vpop.f32.mrb[0].mxu0
    %1314 = vdwg.mxu0
    %v1315 = vadd.f32 %v1240, %v1312
    %v1316 = vlaneseq
    %v1317 = vshrl.u32 %v1316, 7
    %v1318 = vsub.s32 0, %v1317
    %v1319 = vrot.slane %v1017, %v1318
    %v1320 = vadd.f32 %v1315, %v1319
    %v1321 = vld [vmem:[%s1 + $0x500] sm:$0xff]
    %v1322 = vld [vmem:[#allocation2 + $0x4] sm:$0x1]
    %v1323 = vlaneseq
    %v1324 = vshrl.u32 %v1323, 7
    %v1325 = vsub.s32 0, %v1324
    %v1326 = vrot.slane %v1322, %v1325
    %vm1327 = vcmask 64512
    %v1329 = vsel %vm1327, %v1320, 0
    %1331 = vmatprep.subr.mxu0 0.0
    %1332 = vmatpush1.msra.mxu0 %v1321
    %1333 = vmatprep.subr.mxu0 0.0
    %1334 = vmatpush1.msra.mxu0 0.0
    %1335 = vmatprep.subr.mxu0 0.0
    %1336 = vmatpush1.msra.mxu0 0.0
    %1337 = vmatprep.subr.mxu0 0.0
    %1338 = vmatpush1.msra.mxu0 0.0
    %1339 = vmatprep.subr.mxu0 0.0
    %1340 = vmatpush1.msra.mxu0 0.0
    %1341 = vmatprep.subr.mxu0 0.0
    %1342 = vmatpush1.msra.mxu0 0.0
    %1343 = vmatprep.subr.mxu0 0.0
    %1344 = vmatpush1.msra.mxu0 0.0
    %1345 = vmatprep.subr.mxu0 0.0
    %1346 = vmatpush1.msra.mxu0 0.0
    %1347 = vmatprep.subr.mxu0 0.0
    %1348 = vmatpush1.msra.mxu0 0.0
    %1349 = vmatprep.subr.mxu0 0.0
    %1350 = vmatpush1.msra.mxu0 0.0
    %1351 = vmatprep.subr.mxu0 0.0
    %1352 = vmatpush1.msra.mxu0 0.0
    %1353 = vmatprep.subr.mxu0 0.0
    %1354 = vmatpush1.msra.mxu0 0.0
    %1355 = vmatprep.subr.mxu0 0.0
    %1356 = vmatpush1.msra.mxu0 0.0
    %1357 = vmatprep.subr.mxu0 0.0
    %1358 = vmatpush1.msra.mxu0 0.0
    %1359 = vmatprep.subr.mxu0 0.0
    %1360 = vmatpush1.msra.mxu0 0.0
    %1361 = vmatprep.subr.mxu0 0.0
    %1362 = vmatpush1.msra.mxu0 0.0
    %1363 = vmatprep.subr.mxu0 0.0
    %1364 = vmatpush1.msra.mxu0 0.0
    %1365 = vmatprep.subr.mxu0 0.0
    %1366 = vmatpush1.msra.mxu0 0.0
    %1367 = vmatprep.subr.mxu0 0.0
    %1368 = vmatpush1.msra.mxu0 0.0
    %1369 = vmatprep.subr.mxu0 0.0
    %1370 = vmatpush1.msra.mxu0 0.0
    %1371 = vmatprep.subr.mxu0 0.0
    %1372 = vmatpush1.msra.mxu0 0.0
    %1373 = vmatprep.subr.mxu0 0.0
    %1374 = vmatpush1.msra.mxu0 0.0
    %1375 = vmatprep.subr.mxu0 0.0
    %1376 = vmatpush1.msra.mxu0 0.0
    %1377 = vmatprep.subr.mxu0 0.0
    %1378 = vmatpush1.msra.mxu0 0.0
    %1379 = vmatprep.subr.mxu0 0.0
    %1380 = vmatpush1.msra.mxu0 0.0
    %1381 = vmatprep.subr.mxu0 0.0
    %1382 = vmatpush1.msra.mxu0 0.0
    %1383 = vmatprep.subr.mxu0 0.0
    %1384 = vmatpush1.msra.mxu0 0.0
    %1385 = vmatprep.subr.mxu0 0.0
    %1386 = vmatpush1.msra.mxu0 0.0
    %1387 = vmatprep.subr.mxu0 0.0
    %1388 = vmatpush1.msra.mxu0 0.0
    %1389 = vmatprep.subr.mxu0 0.0
    %1390 = vmatpush1.msra.mxu0 0.0
    %1391 = vmatprep.subr.mxu0 0.0
    %1392 = vmatpush1.msra.mxu0 0.0
    %1393 = vmatprep.subr.mxu0 0.0
    %1394 = vmatpush1.msra.mxu0 0.0
    %1395 = vmatprep.mubr.f32.mxu0 0.0
    %1396 = vmatmul.mubr.f32.gmra.mrb[0].mxu0 %v1329
    %v1397 = vpop.f32.mrb[0].mxu0
    %v1398 = vadd.f32 %v1326, %v1397
    %v1399 = vpop.f32.mrb[0].mxu0
    %1400 = vdwg.mxu0
    %1401 = vst [vmem:[%s3 + $0x10] sm:$0x3] %v1398
    %1402 = vrot.lane.b32.xlu0 %v1320, 120
    %v1403 = vpop.permute.xlu0 %1402
    %v1404 = vsel %vm1327, %v1403, 0
    %1406 = vmatprep.subr.mxu0 0.0
    %1407 = vmatpush1.msra.mxu0 %v1321
    %1408 = vmatprep.subr.mxu0 0.0
    %1409 = vmatpush1.msra.mxu0 0.0
    %1410 = vmatprep.subr.mxu0 0.0
    %1411 = vmatpush1.msra.mxu0 0.0
    %1412 = vmatprep.subr.mxu0 0.0
    %1413 = vmatpush1.msra.mxu0 0.0
    %1414 = vmatprep.subr.mxu0 0.0
    %1415 = vmatpush1.msra.mxu0 0.0
    %1416 = vmatprep.subr.mxu0 0.0
    %1417 = vmatpush1.msra.mxu0 0.0
    %1418 = vmatprep.subr.mxu0 0.0
    %1419 = vmatpush1.msra.mxu0 0.0
    %1420 = vmatprep.subr.mxu0 0.0
    %1421 = vmatpush1.msra.mxu0 0.0
    %1422 = vmatprep.subr.mxu0 0.0
    %1423 = vmatpush1.msra.mxu0 0.0
    %1424 = vmatprep.subr.mxu0 0.0
    %1425 = vmatpush1.msra.mxu0 0.0
    %1426 = vmatprep.subr.mxu0 0.0
    %1427 = vmatpush1.msra.mxu0 0.0
    %1428 = vmatprep.subr.mxu0 0.0
    %1429 = vmatpush1.msra.mxu0 0.0
    %1430 = vmatprep.subr.mxu0 0.0
    %1431 = vmatpush1.msra.mxu0 0.0
    %1432 = vmatprep.subr.mxu0 0.0
    %1433 = vmatpush1.msra.mxu0 0.0
    %1434 = vmatprep.subr.mxu0 0.0
    %1435 = vmatpush1.msra.mxu0 0.0
    %1436 = vmatprep.subr.mxu0 0.0
    %1437 = vmatpush1.msra.mxu0 0.0
    %1438 = vmatprep.subr.mxu0 0.0
    %1439 = vmatpush1.msra.mxu0 0.0
    %1440 = vmatprep.subr.mxu0 0.0
    %1441 = vmatpush1.msra.mxu0 0.0
    %1442 = vmatprep.subr.mxu0 0.0
    %1443 = vmatpush1.msra.mxu0 0.0
    %1444 = vmatprep.subr.mxu0 0.0
    %1445 = vmatpush1.msra.mxu0 0.0
    %1446 = vmatprep.subr.mxu0 0.0
    %1447 = vmatpush1.msra.mxu0 0.0
    %1448 = vmatprep.subr.mxu0 0.0
    %1449 = vmatpush1.msra.mxu0 0.0
    %1450 = vmatprep.subr.mxu0 0.0
    %1451 = vmatpush1.msra.mxu0 0.0
    %1452 = vmatprep.subr.mxu0 0.0
    %1453 = vmatpush1.msra.mxu0 0.0
    %1454 = vmatprep.subr.mxu0 0.0
    %1455 = vmatpush1.msra.mxu0 0.0
    %1456 = vmatprep.subr.mxu0 0.0
    %1457 = vmatpush1.msra.mxu0 0.0
    %1458 = vmatprep.subr.mxu0 0.0
    %1459 = vmatpush1.msra.mxu0 0.0
    %1460 = vmatprep.subr.mxu0 0.0
    %1461 = vmatpush1.msra.mxu0 0.0
    %1462 = vmatprep.subr.mxu0 0.0
    %1463 = vmatpush1.msra.mxu0 0.0
    %1464 = vmatprep.subr.mxu0 0.0
    %1465 = vmatpush1.msra.mxu0 0.0
    %1466 = vmatprep.subr.mxu0 0.0
    %1467 = vmatpush1.msra.mxu0 0.0
    %1468 = vmatprep.subr.mxu0 0.0
    %1469 = vmatpush1.msra.mxu0 0.0
    %1470 = vmatprep.mubr.f32.mxu0 0.0
    %1471 = vmatmul.mubr.f32.gmra.mrb[0].mxu0 %v1404
    %v1472 = vpop.f32.mrb[0].mxu0
    %v1473 = vadd.f32 %v1326, %v1472
    %v1474 = vpop.f32.mrb[0].mxu0
    %1475 = vdwg.mxu0
    %v1477 = vrot.slane %v1473, 6
    %1479 = vst [vmem:[%s3 + $0x10] sm:$0xc] %v1477
    %1480 = vrot.lane.b32.xlu0 %v1320, 112
    %v1481 = vpop.permute.xlu0 %1480
    %v1482 = vsel %vm1327, %v1481, 0
    %1484 = vmatprep.subr.mxu0 0.0
    %1485 = vmatpush1.msra.mxu0 %v1321
    %1486 = vmatprep.subr.mxu0 0.0
    %1487 = vmatpush1.msra.mxu0 0.0
    %1488 = vmatprep.subr.mxu0 0.0
    %1489 = vmatpush1.msra.mxu0 0.0
    %1490 = vmatprep.subr.mxu0 0.0
    %1491 = vmatpush1.msra.mxu0 0.0
    %1492 = vmatprep.subr.mxu0 0.0
    %1493 = vmatpush1.msra.mxu0 0.0
    %1494 = vmatprep.subr.mxu0 0.0
    %1495 = vmatpush1.msra.mxu0 0.0
    %1496 = vmatprep.subr.mxu0 0.0
    %1497 = vmatpush1.msra.mxu0 0.0
    %1498 = vmatprep.subr.mxu0 0.0
    %1499 = vmatpush1.msra.mxu0 0.0
    %1500 = vmatprep.subr.mxu0 0.0
    %1501 = vmatpush1.msra.mxu0 0.0
    %1502 = vmatprep.subr.mxu0 0.0
    %1503 = vmatpush1.msra.mxu0 0.0
    %1504 = vmatprep.subr.mxu0 0.0
    %1505 = vmatpush1.msra.mxu0 0.0
    %1506 = vmatprep.subr.mxu0 0.0
    %1507 = vmatpush1.msra.mxu0 0.0
    %1508 = vmatprep.subr.mxu0 0.0
    %1509 = vmatpush1.msra.mxu0 0.0
    %1510 = vmatprep.subr.mxu0 0.0
    %1511 = vmatpush1.msra.mxu0 0.0
    %1512 = vmatprep.subr.mxu0 0.0
    %1513 = vmatpush1.msra.mxu0 0.0
    %1514 = vmatprep.subr.mxu0 0.0
    %1515 = vmatpush1.msra.mxu0 0.0
    %1516 = vmatprep.subr.mxu0 0.0
    %1517 = vmatpush1.msra.mxu0 0.0
    %1518 = vmatprep.subr.mxu0 0.0
    %1519 = vmatpush1.msra.mxu0 0.0
    %1520 = vmatprep.subr.mxu0 0.0
    %1521 = vmatpush1.msra.mxu0 0.0
    %1522 = vmatprep.subr.mxu0 0.0
    %1523 = vmatpush1.msra.mxu0 0.0
    %1524 = vmatprep.subr.mxu0 0.0
    %1525 = vmatpush1.msra.mxu0 0.0
    %1526 = vmatprep.subr.mxu0 0.0
    %1527 = vmatpush1.msra.mxu0 0.0
    %1528 = vmatprep.subr.mxu0 0.0
    %1529 = vmatpush1.msra.mxu0 0.0
    %1530 = vmatprep.subr.mxu0 0.0
    %1531 = vmatpush1.msra.mxu0 0.0
    %1532 = vmatprep.subr.mxu0 0.0
    %1533 = vmatpush1.msra.mxu0 0.0
    %1534 = vmatprep.subr.mxu0 0.0
    %1535 = vmatpush1.msra.mxu0 0.0
    %1536 = vmatprep.subr.mxu0 0.0
    %1537 = vmatpush1.msra.mxu0 0.0
    %1538 = vmatprep.subr.mxu0 0.0
    %1539 = vmatpush1.msra.mxu0 0.0
    %1540 = vmatprep.subr.mxu0 0.0
    %1541 = vmatpush1.msra.mxu0 0.0
    %1542 = vmatprep.subr.mxu0 0.0
    %1543 = vmatpush1.msra.mxu0 0.0
    %1544 = vmatprep.subr.mxu0 0.0
    %1545 = vmatpush1.msra.mxu0 0.0
    %1546 = vmatprep.subr.mxu0 0.0
    %1547 = vmatpush1.msra.mxu0 0.0
    %1548 = vmatprep.mubr.f32.mxu0 0.0
    %1549 = vmatmul.mubr.f32.gmra.mrb[0].mxu0 %v1482
    %v1550 = vpop.f32.mrb[0].mxu0
    %v1551 = vadd.f32 %v1326, %v1550
    %v1552 = vpop.f32.mrb[0].mxu0
    %1553 = vdwg.mxu0
    %v1555 = vrot.slane %v1551, 4
    %1557 = vst [vmem:[%s3 + $0x10] sm:$0x30] %v1555
    %1558 = vrot.lane.b32.xlu0 %v1320, 104
    %v1559 = vpop.permute.xlu0 %1558
    %v1560 = vsel %vm1327, %v1559, 0
    %1562 = vmatprep.subr.mxu0 0.0
    %1563 = vmatpush1.msra.mxu0 %v1321
    %1564 = vmatprep.subr.mxu0 0.0
    %1565 = vmatpush1.msra.mxu0 0.0
    %1566 = vmatprep.subr.mxu0 0.0
    %1567 = vmatpush1.msra.mxu0 0.0
    %1568 = vmatprep.subr.mxu0 0.0
    %1569 = vmatpush1.msra.mxu0 0.0
    %1570 = vmatprep.subr.mxu0 0.0
    %1571 = vmatpush1.msra.mxu0 0.0
    %1572 = vmatprep.subr.mxu0 0.0
    %1573 = vmatpush1.msra.mxu0 0.0
    %1574 = vmatprep.subr.mxu0 0.0
    %1575 = vmatpush1.msra.mxu0 0.0
    %1576 = vmatprep.subr.mxu0 0.0
    %1577 = vmatpush1.msra.mxu0 0.0
    %1578 = vmatprep.subr.mxu0 0.0
    %1579 = vmatpush1.msra.mxu0 0.0
    %1580 = vmatprep.subr.mxu0 0.0
    %1581 = vmatpush1.msra.mxu0 0.0
    %1582 = vmatprep.subr.mxu0 0.0
    %1583 = vmatpush1.msra.mxu0 0.0
    %1584 = vmatprep.subr.mxu0 0.0
    %1585 = vmatpush1.msra.mxu0 0.0
    %1586 = vmatprep.subr.mxu0 0.0
    %1587 = vmatpush1.msra.mxu0 0.0
    %1588 = vmatprep.subr.mxu0 0.0
    %1589 = vmatpush1.msra.mxu0 0.0
    %1590 = vmatprep.subr.mxu0 0.0
    %1591 = vmatpush1.msra.mxu0 0.0
    %1592 = vmatprep.subr.mxu0 0.0
    %1593 = vmatpush1.msra.mxu0 0.0
    %1594 = vmatprep.subr.mxu0 0.0
    %1595 = vmatpush1.msra.mxu0 0.0
    %1596 = vmatprep.subr.mxu0 0.0
    %1597 = vmatpush1.msra.mxu0 0.0
    %1598 = vmatprep.subr.mxu0 0.0
    %1599 = vmatpush1.msra.mxu0 0.0
    %1600 = vmatprep.subr.mxu0 0.0
    %1601 = vmatpush1.msra.mxu0 0.0
    %1602 = vmatprep.subr.mxu0 0.0
    %1603 = vmatpush1.msra.mxu0 0.0
    %1604 = vmatprep.subr.mxu0 0.0
    %1605 = vmatpush1.msra.mxu0 0.0
    %1606 = vmatprep.subr.mxu0 0.0
    %1607 = vmatpush1.msra.mxu0 0.0
    %1608 = vmatprep.subr.mxu0 0.0
    %1609 = vmatpush1.msra.mxu0 0.0
    %1610 = vmatprep.subr.mxu0 0.0
    %1611 = vmatpush1.msra.mxu0 0.0
    %1612 = vmatprep.subr.mxu0 0.0
    %1613 = vmatpush1.msra.mxu0 0.0
    %1614 = vmatprep.subr.mxu0 0.0
    %1615 = vmatpush1.msra.mxu0 0.0
    %1616 = vmatprep.subr.mxu0 0.0
    %1617 = vmatpush1.msra.mxu0 0.0
    %1618 = vmatprep.subr.mxu0 0.0
    %1619 = vmatpush1.msra.mxu0 0.0
    %1620 = vmatprep.subr.mxu0 0.0
    %1621 = vmatpush1.msra.mxu0 0.0
    %1622 = vmatprep.subr.mxu0 0.0
    %1623 = vmatpush1.msra.mxu0 0.0
    %1624 = vmatprep.subr.mxu0 0.0
    %1625 = vmatpush1.msra.mxu0 0.0
    %1626 = vmatprep.mubr.f32.mxu0 0.0
    %1627 = vmatmul.mubr.f32.gmra.mrb[0].mxu0 %v1560
    %v1628 = vpop.f32.mrb[0].mxu0
    %v1629 = vadd.f32 %v1326, %v1628
    %v1630 = vpop.f32.mrb[0].mxu0
    %1631 = vdwg.mxu0
    %v1633 = vrot.slane %v1629, 2
    %1635 = vst [vmem:[%s3 + $0x10] sm:$0xc0] %v1633
    %v1636 = vld [vmem:[#allocation2 + $0x5] sm:$0x1]
    %v1637 = vld [vmem:[%s1 + $0x580] sm:$0xff]
    %v1638 = vld [vmem:[%s1 + $0x600] sm:$0xff]
    %1639 = vmatprep.subr.mxu0 0.0
    %1640 = vmatpush1.msra.mxu0 %v1638
    %1641 = vmatprep.subr.mxu0 0.0
    %1642 = vmatpush1.msra.mxu0 0.0
    %1643 = vmatprep.subr.mxu0 0.0
    %1644 = vmatpush1.msra.mxu0 0.0
    %1645 = vmatprep.subr.mxu0 0.0
    %1646 = vmatpush1.msra.mxu0 0.0
    %1647 = vmatprep.subr.mxu0 0.0
    %1648 = vmatpush1.msra.mxu0 0.0
    %1649 = vmatprep.subr.mxu0 0.0
    %1650 = vmatpush1.msra.mxu0 0.0
    %1651 = vmatprep.subr.mxu0 0.0
    %1652 = vmatpush1.msra.mxu0 0.0
    %1653 = vmatprep.subr.mxu0 0.0
    %1654 = vmatpush1.msra.mxu0 0.0
    %1655 = vmatprep.subr.mxu0 0.0
    %1656 = vmatpush1.msra.mxu0 0.0
    %1657 = vmatprep.subr.mxu0 0.0
    %1658 = vmatpush1.msra.mxu0 0.0
    %1659 = vmatprep.subr.mxu0 0.0
    %1660 = vmatpush1.msra.mxu0 0.0
    %1661 = vmatprep.subr.mxu0 0.0
    %1662 = vmatpush1.msra.mxu0 0.0
    %1663 = vmatprep.subr.mxu0 0.0
    %1664 = vmatpush1.msra.mxu0 0.0
    %1665 = vmatprep.subr.mxu0 0.0
    %1666 = vmatpush1.msra.mxu0 0.0
    %1667 = vmatprep.subr.mxu0 0.0
    %1668 = vmatpush1.msra.mxu0 0.0
    %1669 = vmatprep.subr.mxu0 0.0
    %1670 = vmatpush1.msra.mxu0 0.0
    %1671 = vmatprep.subr.mxu0 0.0
    %1672 = vmatpush1.msra.mxu0 0.0
    %1673 = vmatprep.subr.mxu0 0.0
    %1674 = vmatpush1.msra.mxu0 0.0
    %1675 = vmatprep.subr.mxu0 0.0
    %1676 = vmatpush1.msra.mxu0 0.0
    %1677 = vmatprep.subr.mxu0 0.0
    %1678 = vmatpush1.msra.mxu0 0.0
    %1679 = vmatprep.subr.mxu0 0.0
    %1680 = vmatpush1.msra.mxu0 0.0
    %1681 = vmatprep.subr.mxu0 0.0
    %1682 = vmatpush1.msra.mxu0 0.0
    %1683 = vmatprep.subr.mxu0 0.0
    %1684 = vmatpush1.msra.mxu0 0.0
    %1685 = vmatprep.subr.mxu0 0.0
    %1686 = vmatpush1.msra.mxu0 0.0
    %1687 = vmatprep.subr.mxu0 0.0
    %1688 = vmatpush1.msra.mxu0 0.0
    %1689 = vmatprep.subr.mxu0 0.0
    %1690 = vmatpush1.msra.mxu0 0.0
    %1691 = vmatprep.subr.mxu0 0.0
    %1692 = vmatpush1.msra.mxu0 0.0
    %1693 = vmatprep.subr.mxu0 0.0
    %1694 = vmatpush1.msra.mxu0 0.0
    %1695 = vmatprep.subr.mxu0 0.0
    %1696 = vmatpush1.msra.mxu0 0.0
    %1697 = vmatprep.subr.mxu0 0.0
    %1698 = vmatpush1.msra.mxu0 0.0
    %1699 = vmatprep.subr.mxu0 0.0
    %1700 = vmatpush1.msra.mxu0 0.0
    %1701 = vmatprep.subr.mxu0 0.0
    %1702 = vmatpush1.msra.mxu0 0.0
    %1703 = vmatprep.mubr.f32.mxu0 0.0
    %1704 = vmatmul.mubr.f32.gmra.mrb[0].mxu0 %v1404
    %v1705 = vpop.f32.mrb[0].mxu0
    %v1706 = vadd.f32 0.0, %v1705
    %v1707 = vpop.f32.mrb[0].mxu0
    %1708 = vdwg.mxu0
    %1709 = vmatprep.subr.mxu0 0.0
    %1710 = vmatpush1.msra.mxu0 %v1637
    %1711 = vmatprep.subr.mxu0 0.0
    %1712 = vmatpush1.msra.mxu0 0.0
    %1713 = vmatprep.subr.mxu0 0.0
    %1714 = vmatpush1.msra.mxu0 0.0
    %1715 = vmatprep.subr.mxu0 0.0
    %1716 = vmatpush1.msra.mxu0 0.0
    %1717 = vmatprep.subr.mxu0 0.0
    %1718 = vmatpush1.msra.mxu0 0.0
    %1719 = vmatprep.subr.mxu0 0.0
    %1720 = vmatpush1.msra.mxu0 0.0
    %1721 = vmatprep.subr.mxu0 0.0
    %1722 = vmatpush1.msra.mxu0 0.0
    %1723 = vmatprep.subr.mxu0 0.0
    %1724 = vmatpush1.msra.mxu0 0.0
    %1725 = vmatprep.subr.mxu0 0.0
    %1726 = vmatpush1.msra.mxu0 0.0
    %1727 = vmatprep.subr.mxu0 0.0
    %1728 = vmatpush1.msra.mxu0 0.0
    %1729 = vmatprep.subr.mxu0 0.0
    %1730 = vmatpush1.msra.mxu0 0.0
    %1731 = vmatprep.subr.mxu0 0.0
    %1732 = vmatpush1.msra.mxu0 0.0
    %1733 = vmatprep.subr.mxu0 0.0
    %1734 = vmatpush1.msra.mxu0 0.0
    %1735 = vmatprep.subr.mxu0 0.0
    %1736 = vmatpush1.msra.mxu0 0.0
    %1737 = vmatprep.subr.mxu0 0.0
    %1738 = vmatpush1.msra.mxu0 0.0
    %1739 = vmatprep.subr.mxu0 0.0
    %1740 = vmatpush1.msra.mxu0 0.0
    %1741 = vmatprep.subr.mxu0 0.0
    %1742 = vmatpush1.msra.mxu0 0.0
    %1743 = vmatprep.subr.mxu0 0.0
    %1744 = vmatpush1.msra.mxu0 0.0
    %1745 = vmatprep.subr.mxu0 0.0
    %1746 = vmatpush1.msra.mxu0 0.0
    %1747 = vmatprep.subr.mxu0 0.0
    %1748 = vmatpush1.msra.mxu0 0.0
    %1749 = vmatprep.subr.mxu0 0.0
    %1750 = vmatpush1.msra.mxu0 0.0
    %1751 = vmatprep.subr.mxu0 0.0
    %1752 = vmatpush1.msra.mxu0 0.0
    %1753 = vmatprep.subr.mxu0 0.0
    %1754 = vmatpush1.msra.mxu0 0.0
    %1755 = vmatprep.subr.mxu0 0.0
    %1756 = vmatpush1.msra.mxu0 0.0
    %1757 = vmatprep.subr.mxu0 0.0
    %1758 = vmatpush1.msra.mxu0 0.0
    %1759 = vmatprep.subr.mxu0 0.0
    %1760 = vmatpush1.msra.mxu0 0.0
    %1761 = vmatprep.subr.mxu0 0.0
    %1762 = vmatpush1.msra.mxu0 0.0
    %1763 = vmatprep.subr.mxu0 0.0
    %1764 = vmatpush1.msra.mxu0 0.0
    %1765 = vmatprep.subr.mxu0 0.0
    %1766 = vmatpush1.msra.mxu0 0.0
    %1767 = vmatprep.subr.mxu0 0.0
    %1768 = vmatpush1.msra.mxu0 0.0
    %1769 = vmatprep.subr.mxu0 0.0
    %1770 = vmatpush1.msra.mxu0 0.0
    %1771 = vmatprep.subr.mxu0 0.0
    %1772 = vmatpush1.msra.mxu0 0.0
    %1773 = vmatprep.mubr.f32.mxu0 0.0
    %1774 = vmatmul.mubr.f32.gmra.mrb[0].mxu0 %v1329
    %v1775 = vpop.f32.mrb[0].mxu0
    %v1776 = vadd.f32 %v1706, %v1775
    %v1777 = vpop.f32.mrb[0].mxu0
    %1778 = vdwg.mxu0
    %v1779 = vld [vmem:[%s1 + $0x680] sm:$0xff]
    %1780 = vmatprep.subr.mxu0 0.0
    %1781 = vmatpush1.msra.mxu0 %v1779
    %1782 = vmatprep.subr.mxu0 0.0
    %1783 = vmatpush1.msra.mxu0 0.0
    %1784 = vmatprep.subr.mxu0 0.0
    %1785 = vmatpush1.msra.mxu0 0.0
    %1786 = vmatprep.subr.mxu0 0.0
    %1787 = vmatpush1.msra.mxu0 0.0
    %1788 = vmatprep.subr.mxu0 0.0
    %1789 = vmatpush1.msra.mxu0 0.0
    %1790 = vmatprep.subr.mxu0 0.0
    %1791 = vmatpush1.msra.mxu0 0.0
    %1792 = vmatprep.subr.mxu0 0.0
    %1793 = vmatpush1.msra.mxu0 0.0
    %1794 = vmatprep.subr.mxu0 0.0
    %1795 = vmatpush1.msra.mxu0 0.0
    %1796 = vmatprep.subr.mxu0 0.0
    %1797 = vmatpush1.msra.mxu0 0.0
    %1798 = vmatprep.subr.mxu0 0.0
    %1799 = vmatpush1.msra.mxu0 0.0
    %1800 = vmatprep.subr.mxu0 0.0
    %1801 = vmatpush1.msra.mxu0 0.0
    %1802 = vmatprep.subr.mxu0 0.0
    %1803 = vmatpush1.msra.mxu0 0.0
    %1804 = vmatprep.subr.mxu0 0.0
    %1805 = vmatpush1.msra.mxu0 0.0
    %1806 = vmatprep.subr.mxu0 0.0
    %1807 = vmatpush1.msra.mxu0 0.0
    %1808 = vmatprep.subr.mxu0 0.0
    %1809 = vmatpush1.msra.mxu0 0.0
    %1810 = vmatprep.subr.mxu0 0.0
    %1811 = vmatpush1.msra.mxu0 0.0
    %1812 = vmatprep.subr.mxu0 0.0
    %1813 = vmatpush1.msra.mxu0 0.0
    %1814 = vmatprep.subr.mxu0 0.0
    %1815 = vmatpush1.msra.mxu0 0.0
    %1816 = vmatprep.subr.mxu0 0.0
    %1817 = vmatpush1.msra.mxu0 0.0
    %1818 = vmatprep.subr.mxu0 0.0
    %1819 = vmatpush1.msra.mxu0 0.0
    %1820 = vmatprep.subr.mxu0 0.0
    %1821 = vmatpush1.msra.mxu0 0.0
    %1822 = vmatprep.subr.mxu0 0.0
    %1823 = vmatpush1.msra.mxu0 0.0
    %1824 = vmatprep.subr.mxu0 0.0
    %1825 = vmatpush1.msra.mxu0 0.0
    %1826 = vmatprep.subr.mxu0 0.0
    %1827 = vmatpush1.msra.mxu0 0.0
    %1828 = vmatprep.subr.mxu0 0.0
    %1829 = vmatpush1.msra.mxu0 0.0
    %1830 = vmatprep.subr.mxu0 0.0
    %1831 = vmatpush1.msra.mxu0 0.0
    %1832 = vmatprep.subr.mxu0 0.0
    %1833 = vmatpush1.msra.mxu0 0.0
    %1834 = vmatprep.subr.mxu0 0.0
    %1835 = vmatpush1.msra.mxu0 0.0
    %1836 = vmatprep.subr.mxu0 0.0
    %1837 = vmatpush1.msra.mxu0 0.0
    %1838 = vmatprep.subr.mxu0 0.0
    %1839 = vmatpush1.msra.mxu0 0.0
    %1840 = vmatprep.subr.mxu0 0.0
    %1841 = vmatpush1.msra.mxu0 0.0
    %1842 = vmatprep.subr.mxu0 0.0
    %1843 = vmatpush1.msra.mxu0 0.0
    %1844 = vmatprep.mubr.f32.mxu0 0.0
    %1845 = vmatmul.mubr.f32.gmra.mrb[0].mxu0 %v1482
    %v1846 = vpop.f32.mrb[0].mxu0
    %v1847 = vadd.f32 0.0, %v1846
    %v1848 = vpop.f32.mrb[0].mxu0
    %1849 = vdwg.mxu0
    %v1850 = vadd.f32 %v1776, %v1847
    %v1851 = vld [vmem:[%s1 + $0x700] sm:$0xff]
    %1852 = vmatprep.subr.mxu0 0.0
    %1853 = vmatpush1.msra.mxu0 %v1851
    %1854 = vmatprep.subr.mxu0 0.0
    %1855 = vmatpush1.msra.mxu0 0.0
    %1856 = vmatprep.subr.mxu0 0.0
    %1857 = vmatpush1.msra.mxu0 0.0
    %1858 = vmatprep.subr.mxu0 0.0
    %1859 = vmatpush1.msra.mxu0 0.0
    %1860 = vmatprep.subr.mxu0 0.0
    %1861 = vmatpush1.msra.mxu0 0.0
    %1862 = vmatprep.subr.mxu0 0.0
    %1863 = vmatpush1.msra.mxu0 0.0
    %1864 = vmatprep.subr.mxu0 0.0
    %1865 = vmatpush1.msra.mxu0 0.0
    %1866 = vmatprep.subr.mxu0 0.0
    %1867 = vmatpush1.msra.mxu0 0.0
    %1868 = vmatprep.subr.mxu0 0.0
    %1869 = vmatpush1.msra.mxu0 0.0
    %1870 = vmatprep.subr.mxu0 0.0
    %1871 = vmatpush1.msra.mxu0 0.0
    %1872 = vmatprep.subr.mxu0 0.0
    %1873 = vmatpush1.msra.mxu0 0.0
    %1874 = vmatprep.subr.mxu0 0.0
    %1875 = vmatpush1.msra.mxu0 0.0
    %1876 = vmatprep.subr.mxu0 0.0
    %1877 = vmatpush1.msra.mxu0 0.0
    %1878 = vmatprep.subr.mxu0 0.0
    %1879 = vmatpush1.msra.mxu0 0.0
    %1880 = vmatprep.subr.mxu0 0.0
    %1881 = vmatpush1.msra.mxu0 0.0
    %1882 = vmatprep.subr.mxu0 0.0
    %1883 = vmatpush1.msra.mxu0 0.0
    %1884 = vmatprep.subr.mxu0 0.0
    %1885 = vmatpush1.msra.mxu0 0.0
    %1886 = vmatprep.subr.mxu0 0.0
    %1887 = vmatpush1.msra.mxu0 0.0
    %1888 = vmatprep.subr.mxu0 0.0
    %1889 = vmatpush1.msra.mxu0 0.0
    %1890 = vmatprep.subr.mxu0 0.0
    %1891 = vmatpush1.msra.mxu0 0.0
    %1892 = vmatprep.subr.mxu0 0.0
    %1893 = vmatpush1.msra.mxu0 0.0
    %1894 = vmatprep.subr.mxu0 0.0
    %1895 = vmatpush1.msra.mxu0 0.0
    %1896 = vmatprep.subr.mxu0 0.0
    %1897 = vmatpush1.msra.mxu0 0.0
    %1898 = vmatprep.subr.mxu0 0.0
    %1899 = vmatpush1.msra.mxu0 0.0
    %1900 = vmatprep.subr.mxu0 0.0
    %1901 = vmatpush1.msra.mxu0 0.0
    %1902 = vmatprep.subr.mxu0 0.0
    %1903 = vmatpush1.msra.mxu0 0.0
    %1904 = vmatprep.subr.mxu0 0.0
    %1905 = vmatpush1.msra.mxu0 0.0
    %1906 = vmatprep.subr.mxu0 0.0
    %1907 = vmatpush1.msra.mxu0 0.0
    %1908 = vmatprep.subr.mxu0 0.0
    %1909 = vmatpush1.msra.mxu0 0.0
    %1910 = vmatprep.subr.mxu0 0.0
    %1911 = vmatpush1.msra.mxu0 0.0
    %1912 = vmatprep.subr.mxu0 0.0
    %1913 = vmatpush1.msra.mxu0 0.0
    %1914 = vmatprep.subr.mxu0 0.0
    %1915 = vmatpush1.msra.mxu0 0.0
    %1916 = vmatprep.mubr.f32.mxu0 0.0
    %1917 = vmatmul.mubr.f32.gmra.mrb[0].mxu0 %v1560
    %v1918 = vpop.f32.mrb[0].mxu0
    %v1919 = vadd.f32 0.0, %v1918
    %v1920 = vpop.f32.mrb[0].mxu0
    %1921 = vdwg.mxu0
    %v1922 = vadd.f32 %v1850, %v1919
    %v1923 = vlaneseq
    %v1924 = vshrl.u32 %v1923, 7
    %v1925 = vsub.s32 0, %v1924
    %v1926 = vrot.slane %v1636, %v1925
    %v1927 = vadd.f32 %v1922, %v1926
    %1928 = vst [vmem:[%s3 + $0x18] sm:$0x3] %v1927
    // Predicated region
    $region18: #{fancy_separator_forward.1} parent=1 // pred_check
      _
    $region19: #{fancy_separator_forward.1} parent=1 // pred_check_branch
      %1930 = sbr.rel (0) target = $region21
    $region20: #{fancy_separator_forward.1} parent=1 // pred_region
      _
    $region21: #{fancy_separator_forward.1} parent=1 // pred_fallthru
      _
    // Predicated region
    $region22: #{fancy_separator_forward.1} parent=1 // pred_check
      _
    $region23: #{fancy_separator_forward.1} parent=1 // pred_check_branch
      %1932 = sbr.rel (0) target = $region25
    $region24: #{fancy_separator_forward.1} parent=1 // pred_region
      _
    $region25: #{fancy_separator_forward.1} parent=1 // pred_fallthru
      _
    %1933 = vsyncpa [#allocation3], 1

</llo_original>
